<compile_context>
chip_gen: v7x
topology: tpu7x:2x2x1
jax: 0.10.0
libtpu: 0.0.40
codegen_flags: <defaults>
</compile_context>

<pallas_src>
import jax
import jax.numpy as jnp
from jax.experimental import pallas as pl
from jax.experimental.pallas import tpu as pltpu  # noqa: F401  (TPU backend assumed)

# ---- small synthetic RoBERTa config (shapes implied by RobertaForSequenceClassification) ----
VOCAB = 100
MAX_POS = 64
H = 64            # hidden size
NH = 2            # attention heads
HD = H // NH      # head dim
INTER = 128       # FFN intermediate size
NLAYERS = 2
NUM_LABELS = 2
PAD_IDX = 1
EPS = 1e-5


# ----------------------------- in-kernel helpers -----------------------------
def _ln(x, g, b):
    # f32 LayerNorm (kept in f32 on all gens; v5e has no bf16 VALU path).
    mu = jnp.mean(x, axis=-1, keepdims=True)
    var = jnp.mean((x - mu) ** 2, axis=-1, keepdims=True)
    return (x - mu) * jax.lax.rsqrt(var + EPS) * g + b


def _gelu(x):
    # exact (erf-based) gelu, matching HF RoBERTa's default "gelu" activation
    return 0.5 * x * (1.0 + jax.lax.erf(x * (1.0 / jnp.sqrt(2.0)).astype(x.dtype)))


def _mm(a, b):
    # 2-D MXU matmul, f32 accumulate (operands are already bf16).
    return jnp.dot(a, b, preferred_element_type=jnp.float32)


def _bmm(eq, a, b):
    # single-leading-batch-dim einsum on the MXU, f32 accumulate.
    return jnp.einsum(eq, a, b, preferred_element_type=jnp.float32)


# ----------------------------- fused Pallas kernel -----------------------------
def fused_roberta_kernel(emb_ref, amask_ref, eg_ref, eb_ref,
                         wqkv_ref, bqkv_ref, wo_ref, bo_ref, ln1g_ref, ln1b_ref,
                         w1_ref, b1_ref, w2_ref, b2_ref, ln2g_ref, ln2b_ref,
                         wd_ref, bd_ref, wp_ref, bp_ref,
                         o_ref):
    BS, Hh = emb_ref.shape            # (B*S, H)
    BN, _, S = amask_ref.shape        # (NH*B, 1, S) additive key mask
    B = BS // S
    bf16 = jnp.bfloat16

    amask = amask_ref[...]            # hoisted once; reused every layer

    # Embedding LayerNorm (per-token, so the (B*S, H) folding is exact).
    x = _ln(emb_ref[...], eg_ref[...], eb_ref[...])                     # (B*S, H) f32

    for l in range(NLAYERS):                                            # static unroll
        xb = x.astype(bf16)                                             # cast once per layer

        # fused QKV projection: one lane-dense (B*S, H) x (H, 3H) matmul.
        # 1/sqrt(HD) is pre-folded into the Q columns of wqkv/bqkv.
        qkv = _mm(xb, wqkv_ref[l]) + bqkv_ref[l]                        # (B*S, 3H) f32

        def head(blk, h):
            # static lane slice of the small qkv result; blk: 0=q, 1=k, 2=v.
            col = blk * Hh + h * HD
            return qkv[:, col:col + HD].reshape(B, S, HD).astype(bf16)  # (B, S, HD)

        # fold heads into the batch dim: n = h*B + b  -> (NH*B, S, HD)
        q = jnp.concatenate([head(0, h) for h in range(NH)], axis=0)
        k = jnp.concatenate([head(1, h) for h in range(NH)], axis=0)
        v = jnp.concatenate([head(2, h) for h in range(NH)], axis=0)

        # all sequences x all heads in one batched einsum stream
        scores = _bmm('nqd,nkd->nqk', q, k) + amask                     # (NH*B, S, S) f32
        scores = scores - jnp.max(scores, axis=-1, keepdims=True)
        p = jnp.exp(scores)
        p = p * pl.reciprocal(jnp.sum(p, axis=-1, keepdims=True), approx=True)

        ctx = _bmm('nqk,nkd->nqd', p.astype(bf16), v)                   # (NH*B, S, HD) f32

        # output projection: accumulate per-head 2-D matmuls (NH static, tiny add)
        wo_l = wo_ref[l]                                                # (NH, HD, H) bf16
        attn = bo_ref[l]                                                # (1, H) f32
        for h in range(NH):
            ctx_h = ctx[h * B:(h + 1) * B].reshape(BS, HD).astype(bf16)
            attn = attn + _mm(ctx_h, wo_l[h])                           # (B*S, H)

        h1 = _ln(x + attn, ln1g_ref[l], ln1b_ref[l])                    # attention-output LN
        h1b = h1.astype(bf16)

        inter = _gelu(_mm(h1b, w1_ref[l]) + b1_ref[l])                  # f32 GELU
        ffn = _mm(inter.astype(bf16), w2_ref[l]) + b2_ref[l]
        x = _ln(h1 + ffn, ln2g_ref[l], ln2b_ref[l])                     # output LN

    # RobertaClassificationHead on the <s> token (row 0 of each sequence):
    # dense -> tanh -> out_proj (dropout is identity in eval).
    cls = x.reshape(B, S, Hh)[:, 0, :]                                  # (B, H)
    hcls = jnp.tanh(_mm(cls.astype(bf16), wd_ref[...]) + bd_ref[...])
    o_ref[...] = _mm(hcls.astype(bf16), wp_ref[...]) + bp_ref[...]


# ----------------------------- parameters -----------------------------
def init_params(key):
    def nrm(k, shape):
        return 0.02 * jax.random.normal(k, shape, dtype=jnp.float32)

    keys = iter(jax.random.split(key, 64))
    p = {
        'word_emb': nrm(next(keys), (VOCAB, H)),
        'pos_emb': nrm(next(keys), (MAX_POS, H)),
        'type_emb': nrm(next(keys), (1, H)),
        'emb_ln_g': jnp.ones((1, H), jnp.float32),
        'emb_ln_b': jnp.zeros((1, H), jnp.float32),
        'layers': [],
    }
    for _ in range(NLAYERS):
        lw = {
            'wq': nrm(next(keys), (H, H)), 'bq': jnp.zeros((1, H), jnp.float32),
            'wk': nrm(next(keys), (H, H)), 'bk': jnp.zeros((1, H), jnp.float32),
            'wv': nrm(next(keys), (H, H)), 'bv': jnp.zeros((1, H), jnp.float32),
            'wo': nrm(next(keys), (H, H)), 'bo': jnp.zeros((1, H), jnp.float32),
            'ln1g': jnp.ones((1, H), jnp.float32), 'ln1b': jnp.zeros((1, H), jnp.float32),
            'w1': nrm(next(keys), (H, INTER)), 'b1': jnp.zeros((1, INTER), jnp.float32),
            'w2': nrm(next(keys), (INTER, H)), 'b2': jnp.zeros((1, H), jnp.float32),
            'ln2g': jnp.ones((1, H), jnp.float32), 'ln2b': jnp.zeros((1, H), jnp.float32),
        }
        p['layers'].append(lw)
    p['cls_wd'] = nrm(next(keys), (H, H)); p['cls_bd'] = jnp.zeros((1, H), jnp.float32)
    p['cls_wp'] = nrm(next(keys), (H, NUM_LABELS)); p['cls_bp'] = jnp.zeros((1, NUM_LABELS), jnp.float32)
    return p


def pack_params(p):
    """Host-side repack: stack layers, fuse QKV (scale folded into Q), bf16 MXU weights."""
    L = NLAYERS
    bf16 = jnp.bfloat16
    stk = lambda name: jnp.stack([lw[name] for lw in p['layers']])      # (L, ...)
    scale = 1.0 / (HD ** 0.5)

    wqkv = jnp.concatenate([stk('wq') * scale, stk('wk'), stk('wv')], axis=2)   # (L, H, 3H)
    bqkv = jnp.concatenate([stk('bq') * scale, stk('bk'), stk('bv')], axis=2)   # (L, 1, 3H)

    return dict(
        eg=p['emb_ln_g'], eb=p['emb_ln_b'],
        wqkv=wqkv.astype(bf16), bqkv=bqkv,
        wo=stk('wo').reshape(L, NH, HD, H).astype(bf16),  # rows are heads
        bo=stk('bo'),
        ln1g=stk('ln1g'), ln1b=stk('ln1b'),
        w1=stk('w1').astype(bf16), b1=stk('b1'),
        w2=stk('w2').astype(bf16), b2=stk('b2'),
        ln2g=stk('ln2g'), ln2b=stk('ln2b'),
        wd=p['cls_wd'].astype(bf16), bd=p['cls_bd'],
        wp=p['cls_wp'].astype(bf16), bp=p['cls_bp'],
    )


# ----------------------------- forward (== Roberta.forward) -----------------------------
def roberta_forward(params, packed, content, content_mask):
    # TODO(synk): embedding-table gathers (word/position lookups) and the cumsum
    # position ids stay in plain JAX — data-dependent gathers at this size have
    # no clean Pallas TPU equivalent.
    mask_i = (content != PAD_IDX).astype(jnp.int32)
    pos_ids = jnp.cumsum(mask_i, axis=1) * mask_i + PAD_IDX
    emb = (params['word_emb'][content]
           + params['pos_emb'][pos_ids]
           + params['type_emb'][0][None, None, :])
    B, S, Hh = emb.shape
    emb2 = emb.reshape(B * S, Hh)                                        # batch folded into rows

    # additive key-padding mask, pre-expanded on host to the kernel's (NH*B, 1, S)
    # head-major batch layout (n = h*B + b).
    mask_add = (1.0 - content_mask.astype(jnp.float32)) * -10000.0       # (B, S)
    amask = jnp.broadcast_to(mask_add[None, :, None, :],
                             (NH, B, 1, S)).reshape(NH * B, 1, S)

    w = packed
    logits = pl.pallas_call(
        fused_roberta_kernel,
        out_shape=jax.ShapeDtypeStruct((B, NUM_LABELS), jnp.float32),
        # no grid / no BlockSpecs: every operand is a single whole-array VMEM
        # block (total <200 KB of bf16 weights — fits VMEM on v5e/v6e/v7x).
        # NOTE: at roberta-base scale, switch to grid=(NLAYERS,) weight streaming
        # + a 'parallel' token-tile axis (v7x: 2 TCs, 64 MiB VMEM).
    )(emb2, amask, w['eg'], w['eb'],
      w['wqkv'], w['bqkv'], w['wo'], w['bo'], w['ln1g'], w['ln1b'],
      w['w1'], w['b1'], w['w2'], w['b2'], w['ln2g'], w['ln2b'],
      w['wd'], w['bd'], w['wp'], w['bp'])
    return {'classify_pred': logits}


# ----------------------------- main -----------------------------
if __name__ == "__main__":
    key = jax.random.PRNGKey(0)
    pkey, dkey = jax.random.split(key)
    params = init_params(pkey)
    packed = pack_params(params)

    B, S = 2, 8
    content = jax.random.randint(dkey, (B, S), minval=3, maxval=VOCAB, dtype=jnp.int32)
    content = content.at[:, 0].set(0)                       # <s> token
    content_mask = jnp.ones((B, S), jnp.int32)
    content_mask = content_mask.at[1, 5:].set(0)            # padded tail in second sequence
    content = jnp.where(content_mask == 1, content, PAD_IDX)

    fwd = jax.jit(roberta_forward)
    out = fwd(params, packed, content, content_mask)
    logits = jax.block_until_ready(out['classify_pred'])
    assert logits.shape == (B, NUM_LABELS)
    assert bool(jnp.all(jnp.isfinite(logits)))
    print("KERNEL_OK")
</pallas_src>

<mosaic_0001>
module attributes {stable_mosaic.version = 11 : i64} {
  func.func @fused_roberta_kernel(%arg0: memref<16x64xf32, #tpu.memory_space<vmem>>, %arg1: memref<4x1x8xf32, #tpu.memory_space<vmem>>, %arg2: memref<1x64xf32, #tpu.memory_space<vmem>>, %arg3: memref<1x64xf32, #tpu.memory_space<vmem>>, %arg4: memref<2x64x192xbf16, #tpu.memory_space<vmem>>, %arg5: memref<2x1x192xf32, #tpu.memory_space<vmem>>, %arg6: memref<2x2x32x64xbf16, #tpu.memory_space<vmem>>, %arg7: memref<2x1x64xf32, #tpu.memory_space<vmem>>, %arg8: memref<2x1x64xf32, #tpu.memory_space<vmem>>, %arg9: memref<2x1x64xf32, #tpu.memory_space<vmem>>, %arg10: memref<2x64x128xbf16, #tpu.memory_space<vmem>>, %arg11: memref<2x1x128xf32, #tpu.memory_space<vmem>>, %arg12: memref<2x128x64xbf16, #tpu.memory_space<vmem>>, %arg13: memref<2x1x64xf32, #tpu.memory_space<vmem>>, %arg14: memref<2x1x64xf32, #tpu.memory_space<vmem>>, %arg15: memref<2x1x64xf32, #tpu.memory_space<vmem>>, %arg16: memref<64x64xbf16, #tpu.memory_space<vmem>>, %arg17: memref<1x64xf32, #tpu.memory_space<vmem>>, %arg18: memref<64x2xbf16, #tpu.memory_space<vmem>>, %arg19: memref<1x2xf32, #tpu.memory_space<vmem>>, %arg20: memref<2x2xf32, #tpu.memory_space<vmem>>) attributes {dimension_semantics = [], scalar_prefetch = 0 : i64, scratch_operands = 0 : i64, tpu.core_type = #tpu.core_type<tc>} {
    %c0 = arith.constant 0 : index
    %c0_0 = arith.constant 0 : index
    %c0_1 = arith.constant 0 : index
    %0 = vector.load %arg1[%c0, %c0_0, %c0_1] : memref<4x1x8xf32, #tpu.memory_space<vmem>>, vector<4x1x8xf32>
    %c0_2 = arith.constant 0 : index
    %c0_3 = arith.constant 0 : index
    %1 = vector.load %arg0[%c0_2, %c0_3] : memref<16x64xf32, #tpu.memory_space<vmem>>, vector<16x64xf32>
    %c0_4 = arith.constant 0 : index
    %c0_5 = arith.constant 0 : index
    %2 = vector.load %arg2[%c0_4, %c0_5] : memref<1x64xf32, #tpu.memory_space<vmem>>, vector<1x64xf32>
    %c0_6 = arith.constant 0 : index
    %c0_7 = arith.constant 0 : index
    %3 = vector.load %arg3[%c0_6, %c0_7] : memref<1x64xf32, #tpu.memory_space<vmem>>, vector<1x64xf32>
    %cst = arith.constant dense<0.000000e+00> : vector<16xf32>
    %4 = vector.multi_reduction <add>, %1, %cst [1] : vector<16x64xf32> to vector<16xf32>
    %5 = vector.shape_cast %4 : vector<16xf32> to vector<16x1xf32>
    %cst_8 = arith.constant 6.400000e+01 : f32
    %6 = vector.broadcast %cst_8 : f32 to vector<16x1xf32>
    %7 = arith.divf %5, %6 : vector<16x1xf32>
    %8 = vector.broadcast %7 : vector<16x1xf32> to vector<16x64xf32>
    %9 = arith.subf %1, %8 : vector<16x64xf32>
    %10 = arith.mulf %9, %9 : vector<16x64xf32>
    %cst_9 = arith.constant dense<0.000000e+00> : vector<16xf32>
    %11 = vector.multi_reduction <add>, %10, %cst_9 [1] : vector<16x64xf32> to vector<16xf32>
    %12 = vector.shape_cast %11 : vector<16xf32> to vector<16x1xf32>
    %cst_10 = arith.constant 6.400000e+01 : f32
    %13 = vector.broadcast %cst_10 : f32 to vector<16x1xf32>
    %14 = arith.divf %12, %13 : vector<16x1xf32>
    %15 = vector.broadcast %7 : vector<16x1xf32> to vector<16x64xf32>
    %16 = arith.subf %1, %15 : vector<16x64xf32>
    %cst_11 = arith.constant 9.99999974E-6 : f32
    %17 = vector.broadcast %cst_11 : f32 to vector<16x1xf32>
    %18 = arith.addf %14, %17 : vector<16x1xf32>
    %19 = math.rsqrt %18 : vector<16x1xf32>
    %20 = vector.broadcast %19 : vector<16x1xf32> to vector<16x64xf32>
    %21 = arith.mulf %16, %20 : vector<16x64xf32>
    %22 = vector.broadcast %2 : vector<1x64xf32> to vector<16x64xf32>
    %23 = arith.mulf %21, %22 : vector<16x64xf32>
    %24 = vector.broadcast %3 : vector<1x64xf32> to vector<16x64xf32>
    %25 = arith.addf %23, %24 : vector<16x64xf32>
    %26 = arith.truncf %25 : vector<16x64xf32> to vector<16x64xbf16>
    %c0_12 = arith.constant 0 : index
    %c0_13 = arith.constant 0 : index
    %c0_14 = arith.constant 0 : index
    %27 = vector.load %arg4[%c0_12, %c0_13, %c0_14] : memref<2x64x192xbf16, #tpu.memory_space<vmem>>, vector<1x64x192xbf16>
    %28 = vector.shape_cast %27 : vector<1x64x192xbf16> to vector<64x192xbf16>
    %cst_15 = arith.constant dense<0.000000e+00> : vector<16x192xf32>
    %29 = tpu.matmul %26, %28, %cst_15 {dimension_numbers = #tpu.dot_dimension_numbers<[1], [0], [0], [1], [0, 0, 1, 1], [], []>} : vector<16x64xbf16>, vector<64x192xbf16>, vector<16x192xf32> -> vector<16x192xf32>
    %c0_16 = arith.constant 0 : index
    %c0_17 = arith.constant 0 : index
    %c0_18 = arith.constant 0 : index
    %30 = vector.load %arg5[%c0_16, %c0_17, %c0_18] : memref<2x1x192xf32, #tpu.memory_space<vmem>>, vector<1x1x192xf32>
    %31 = vector.shape_cast %30 : vector<1x1x192xf32> to vector<1x192xf32>
    %32 = vector.broadcast %31 : vector<1x192xf32> to vector<16x192xf32>
    %33 = arith.addf %29, %32 : vector<16x192xf32>
    %34 = vector.extract_strided_slice %33 {offsets = [0, 0], sizes = [16, 32], strides = [1, 1]} : vector<16x192xf32> to vector<16x32xf32>
    %35 = vector.shape_cast %34 : vector<16x32xf32> to vector<2x8x32xf32>
    %36 = arith.truncf %35 : vector<2x8x32xf32> to vector<2x8x32xbf16>
    %37 = vector.extract_strided_slice %33 {offsets = [0, 32], sizes = [16, 32], strides = [1, 1]} : vector<16x192xf32> to vector<16x32xf32>
    %38 = vector.shape_cast %37 : vector<16x32xf32> to vector<2x8x32xf32>
    %39 = arith.truncf %38 : vector<2x8x32xf32> to vector<2x8x32xbf16>
    %40 = tpu.concatenate %36, %39 in 0 : vector<2x8x32xbf16>, vector<2x8x32xbf16> -> vector<4x8x32xbf16>
    %41 = vector.extract_strided_slice %33 {offsets = [0, 64], sizes = [16, 32], strides = [1, 1]} : vector<16x192xf32> to vector<16x32xf32>
    %42 = vector.shape_cast %41 : vector<16x32xf32> to vector<2x8x32xf32>
    %43 = arith.truncf %42 : vector<2x8x32xf32> to vector<2x8x32xbf16>
    %44 = vector.extract_strided_slice %33 {offsets = [0, 96], sizes = [16, 32], strides = [1, 1]} : vector<16x192xf32> to vector<16x32xf32>
    %45 = vector.shape_cast %44 : vector<16x32xf32> to vector<2x8x32xf32>
    %46 = arith.truncf %45 : vector<2x8x32xf32> to vector<2x8x32xbf16>
    %47 = tpu.concatenate %43, %46 in 0 : vector<2x8x32xbf16>, vector<2x8x32xbf16> -> vector<4x8x32xbf16>
    %48 = vector.extract_strided_slice %33 {offsets = [0, 128], sizes = [16, 32], strides = [1, 1]} : vector<16x192xf32> to vector<16x32xf32>
    %49 = vector.shape_cast %48 : vector<16x32xf32> to vector<2x8x32xf32>
    %50 = arith.truncf %49 : vector<2x8x32xf32> to vector<2x8x32xbf16>
    %51 = vector.extract_strided_slice %33 {offsets = [0, 160], sizes = [16, 32], strides = [1, 1]} : vector<16x192xf32> to vector<16x32xf32>
    %52 = vector.shape_cast %51 : vector<16x32xf32> to vector<2x8x32xf32>
    %53 = arith.truncf %52 : vector<2x8x32xf32> to vector<2x8x32xbf16>
    %54 = tpu.concatenate %50, %53 in 0 : vector<2x8x32xbf16>, vector<2x8x32xbf16> -> vector<4x8x32xbf16>
    "tpu.trace_start"() <{level = 10 : i32, message = "nqd,nkd->nqk"}> : () -> ()
    %cst_19 = arith.constant dense<0.000000e+00> : vector<4x8x8xf32>
    %55 = tpu.matmul %40, %47, %cst_19 {dimension_numbers = #tpu.dot_dimension_numbers<[2], [2], [1], [1], [0, 0, 0, 1, 1, 1], [0], [0]>} : vector<4x8x32xbf16>, vector<4x8x32xbf16>, vector<4x8x8xf32> -> vector<4x8x8xf32>
    "tpu.trace_stop"() : () -> ()
    %56 = vector.broadcast %0 : vector<4x1x8xf32> to vector<4x8x8xf32>
    %57 = arith.addf %55, %56 : vector<4x8x8xf32>
    %cst_20 = arith.constant dense<0xFF800000> : vector<4x8xf32>
    %58 = vector.multi_reduction <maximumf>, %57, %cst_20 [2] : vector<4x8x8xf32> to vector<4x8xf32>
    %59 = vector.shape_cast %58 : vector<4x8xf32> to vector<4x8x1xf32>
    %60 = vector.broadcast %59 : vector<4x8x1xf32> to vector<4x8x8xf32>
    %61 = arith.subf %57, %60 : vector<4x8x8xf32>
    %62 = math.exp %61 : vector<4x8x8xf32>
    %cst_21 = arith.constant dense<0.000000e+00> : vector<4x8xf32>
    %63 = vector.multi_reduction <add>, %62, %cst_21 [2] : vector<4x8x8xf32> to vector<4x8xf32>
    %64 = vector.shape_cast %63 : vector<4x8xf32> to vector<4x8x1xf32>
    %65 = tpu.reciprocal %64 {approx = true} : vector<4x8x1xf32> -> vector<4x8x1xf32>
    %66 = vector.broadcast %65 : vector<4x8x1xf32> to vector<4x8x8xf32>
    %67 = arith.mulf %62, %66 : vector<4x8x8xf32>
    %68 = arith.truncf %67 : vector<4x8x8xf32> to vector<4x8x8xbf16>
    "tpu.trace_start"() <{level = 10 : i32, message = "nqk,nkd->nqd"}> : () -> ()
    %cst_22 = arith.constant dense<0.000000e+00> : vector<4x8x32xf32>
    %69 = tpu.matmul %68, %54, %cst_22 {dimension_numbers = #tpu.dot_dimension_numbers<[2], [1], [1], [2], [0, 0, 0, 1, 1, 2], [0], [0]>} : vector<4x8x8xbf16>, vector<4x8x32xbf16>, vector<4x8x32xf32> -> vector<4x8x32xf32>
    "tpu.trace_stop"() : () -> ()
    %c0_23 = arith.constant 0 : index
    %c0_24 = arith.constant 0 : index
    %c0_25 = arith.constant 0 : index
    %c0_26 = arith.constant 0 : index
    %70 = vector.load %arg6[%c0_23, %c0_24, %c0_25, %c0_26] : memref<2x2x32x64xbf16, #tpu.memory_space<vmem>>, vector<1x2x32x64xbf16>
    %71 = vector.shape_cast %70 : vector<1x2x32x64xbf16> to vector<2x32x64xbf16>
    %c0_27 = arith.constant 0 : index
    %c0_28 = arith.constant 0 : index
    %c0_29 = arith.constant 0 : index
    %72 = vector.load %arg7[%c0_27, %c0_28, %c0_29] : memref<2x1x64xf32, #tpu.memory_space<vmem>>, vector<1x1x64xf32>
    %73 = vector.shape_cast %72 : vector<1x1x64xf32> to vector<1x64xf32>
    %74 = vector.extract_strided_slice %69 {offsets = [0, 0, 0], sizes = [2, 8, 32], strides = [1, 1, 1]} : vector<4x8x32xf32> to vector<2x8x32xf32>
    %75 = vector.shape_cast %74 : vector<2x8x32xf32> to vector<16x32xf32>
    %76 = arith.truncf %75 : vector<16x32xf32> to vector<16x32xbf16>
    %77 = vector.extract_strided_slice %71 {offsets = [0, 0, 0], sizes = [1, 32, 64], strides = [1, 1, 1]} : vector<2x32x64xbf16> to vector<1x32x64xbf16>
    %78 = vector.shape_cast %77 : vector<1x32x64xbf16> to vector<32x64xbf16>
    %cst_30 = arith.constant dense<0.000000e+00> : vector<16x64xf32>
    %79 = tpu.matmul %76, %78, %cst_30 {dimension_numbers = #tpu.dot_dimension_numbers<[1], [0], [0], [1], [0, 0, 1, 1], [], []>} : vector<16x32xbf16>, vector<32x64xbf16>, vector<16x64xf32> -> vector<16x64xf32>
    %80 = vector.broadcast %73 : vector<1x64xf32> to vector<16x64xf32>
    %81 = arith.addf %80, %79 : vector<16x64xf32>
    %82 = vector.extract_strided_slice %69 {offsets = [2, 0, 0], sizes = [2, 8, 32], strides = [1, 1, 1]} : vector<4x8x32xf32> to vector<2x8x32xf32>
    %83 = vector.shape_cast %82 : vector<2x8x32xf32> to vector<16x32xf32>
    %84 = arith.truncf %83 : vector<16x32xf32> to vector<16x32xbf16>
    %85 = vector.extract_strided_slice %71 {offsets = [1, 0, 0], sizes = [1, 32, 64], strides = [1, 1, 1]} : vector<2x32x64xbf16> to vector<1x32x64xbf16>
    %86 = vector.shape_cast %85 : vector<1x32x64xbf16> to vector<32x64xbf16>
    %cst_31 = arith.constant dense<0.000000e+00> : vector<16x64xf32>
    %87 = tpu.matmul %84, %86, %cst_31 {dimension_numbers = #tpu.dot_dimension_numbers<[1], [0], [0], [1], [0, 0, 1, 1], [], []>} : vector<16x32xbf16>, vector<32x64xbf16>, vector<16x64xf32> -> vector<16x64xf32>
    %88 = arith.addf %81, %87 : vector<16x64xf32>
    %89 = arith.addf %25, %88 : vector<16x64xf32>
    %c0_32 = arith.constant 0 : index
    %c0_33 = arith.constant 0 : index
    %c0_34 = arith.constant 0 : index
    %90 = vector.load %arg8[%c0_32, %c0_33, %c0_34] : memref<2x1x64xf32, #tpu.memory_space<vmem>>, vector<1x1x64xf32>
    %91 = vector.shape_cast %90 : vector<1x1x64xf32> to vector<1x64xf32>
    %c0_35 = arith.constant 0 : index
    %c0_36 = arith.constant 0 : index
    %c0_37 = arith.constant 0 : index
    %92 = vector.load %arg9[%c0_35, %c0_36, %c0_37] : memref<2x1x64xf32, #tpu.memory_space<vmem>>, vector<1x1x64xf32>
    %93 = vector.shape_cast %92 : vector<1x1x64xf32> to vector<1x64xf32>
    %cst_38 = arith.constant dense<0.000000e+00> : vector<16xf32>
    %94 = vector.multi_reduction <add>, %89, %cst_38 [1] : vector<16x64xf32> to vector<16xf32>
    %95 = vector.shape_cast %94 : vector<16xf32> to vector<16x1xf32>
    %cst_39 = arith.constant 6.400000e+01 : f32
    %96 = vector.broadcast %cst_39 : f32 to vector<16x1xf32>
    %97 = arith.divf %95, %96 : vector<16x1xf32>
    %98 = vector.broadcast %97 : vector<16x1xf32> to vector<16x64xf32>
    %99 = arith.subf %89, %98 : vector<16x64xf32>
    %100 = arith.mulf %99, %99 : vector<16x64xf32>
    %cst_40 = arith.constant dense<0.000000e+00> : vector<16xf32>
    %101 = vector.multi_reduction <add>, %100, %cst_40 [1] : vector<16x64xf32> to vector<16xf32>
    %102 = vector.shape_cast %101 : vector<16xf32> to vector<16x1xf32>
    %cst_41 = arith.constant 6.400000e+01 : f32
    %103 = vector.broadcast %cst_41 : f32 to vector<16x1xf32>
    %104 = arith.divf %102, %103 : vector<16x1xf32>
    %105 = vector.broadcast %97 : vector<16x1xf32> to vector<16x64xf32>
    %106 = arith.subf %89, %105 : vector<16x64xf32>
    %cst_42 = arith.constant 9.99999974E-6 : f32
    %107 = vector.broadcast %cst_42 : f32 to vector<16x1xf32>
    %108 = arith.addf %104, %107 : vector<16x1xf32>
    %109 = math.rsqrt %108 : vector<16x1xf32>
    %110 = vector.broadcast %109 : vector<16x1xf32> to vector<16x64xf32>
    %111 = arith.mulf %106, %110 : vector<16x64xf32>
    %112 = vector.broadcast %91 : vector<1x64xf32> to vector<16x64xf32>
    %113 = arith.mulf %111, %112 : vector<16x64xf32>
    %114 = vector.broadcast %93 : vector<1x64xf32> to vector<16x64xf32>
    %115 = arith.addf %113, %114 : vector<16x64xf32>
    %116 = arith.truncf %115 : vector<16x64xf32> to vector<16x64xbf16>
    %c0_43 = arith.constant 0 : index
    %c0_44 = arith.constant 0 : index
    %c0_45 = arith.constant 0 : index
    %117 = vector.load %arg10[%c0_43, %c0_44, %c0_45] : memref<2x64x128xbf16, #tpu.memory_space<vmem>>, vector<1x64x128xbf16>
    %118 = vector.shape_cast %117 : vector<1x64x128xbf16> to vector<64x128xbf16>
    %cst_46 = arith.constant dense<0.000000e+00> : vector<16x128xf32>
    %119 = tpu.matmul %116, %118, %cst_46 {dimension_numbers = #tpu.dot_dimension_numbers<[1], [0], [0], [1], [0, 0, 1, 1], [], []>} : vector<16x64xbf16>, vector<64x128xbf16>, vector<16x128xf32> -> vector<16x128xf32>
    %c0_47 = arith.constant 0 : index
    %c0_48 = arith.constant 0 : index
    %c0_49 = arith.constant 0 : index
    %120 = vector.load %arg11[%c0_47, %c0_48, %c0_49] : memref<2x1x128xf32, #tpu.memory_space<vmem>>, vector<1x1x128xf32>
    %121 = vector.shape_cast %120 : vector<1x1x128xf32> to vector<1x128xf32>
    %122 = vector.broadcast %121 : vector<1x128xf32> to vector<16x128xf32>
    %123 = arith.addf %119, %122 : vector<16x128xf32>
    %cst_50 = arith.constant 5.000000e-01 : f32
    %124 = vector.broadcast %cst_50 : f32 to vector<16x128xf32>
    %125 = arith.mulf %124, %123 : vector<16x128xf32>
    %cst_51 = arith.constant 2.000000e+00 : f32
    %126 = math.sqrt %cst_51 : f32
    %cst_52 = arith.constant 1.000000e+00 : f32
    %127 = arith.divf %cst_52, %126 : f32
    %128 = vector.broadcast %127 : f32 to vector<16x128xf32>
    %129 = arith.mulf %123, %128 : vector<16x128xf32>
    %130 = math.erf %129 : vector<16x128xf32>
    %cst_53 = arith.constant 1.000000e+00 : f32
    %131 = vector.broadcast %cst_53 : f32 to vector<16x128xf32>
    %132 = arith.addf %131, %130 : vector<16x128xf32>
    %133 = arith.mulf %125, %132 : vector<16x128xf32>
    %134 = arith.truncf %133 : vector<16x128xf32> to vector<16x128xbf16>
    %c0_54 = arith.constant 0 : index
    %c0_55 = arith.constant 0 : index
    %c0_56 = arith.constant 0 : index
    %135 = vector.load %arg12[%c0_54, %c0_55, %c0_56] : memref<2x128x64xbf16, #tpu.memory_space<vmem>>, vector<1x128x64xbf16>
    %136 = vector.shape_cast %135 : vector<1x128x64xbf16> to vector<128x64xbf16>
    %cst_57 = arith.constant dense<0.000000e+00> : vector<16x64xf32>
    %137 = tpu.matmul %134, %136, %cst_57 {dimension_numbers = #tpu.dot_dimension_numbers<[1], [0], [0], [1], [0, 0, 1, 1], [], []>} : vector<16x128xbf16>, vector<128x64xbf16>, vector<16x64xf32> -> vector<16x64xf32>
    %c0_58 = arith.constant 0 : index
    %c0_59 = arith.constant 0 : index
    %c0_60 = arith.constant 0 : index
    %138 = vector.load %arg13[%c0_58, %c0_59, %c0_60] : memref<2x1x64xf32, #tpu.memory_space<vmem>>, vector<1x1x64xf32>
    %139 = vector.shape_cast %138 : vector<1x1x64xf32> to vector<1x64xf32>
    %140 = vector.broadcast %139 : vector<1x64xf32> to vector<16x64xf32>
    %141 = arith.addf %137, %140 : vector<16x64xf32>
    %142 = arith.addf %115, %141 : vector<16x64xf32>
    %c0_61 = arith.constant 0 : index
    %c0_62 = arith.constant 0 : index
    %c0_63 = arith.constant 0 : index
    %143 = vector.load %arg14[%c0_61, %c0_62, %c0_63] : memref<2x1x64xf32, #tpu.memory_space<vmem>>, vector<1x1x64xf32>
    %144 = vector.shape_cast %143 : vector<1x1x64xf32> to vector<1x64xf32>
    %c0_64 = arith.constant 0 : index
    %c0_65 = arith.constant 0 : index
    %c0_66 = arith.constant 0 : index
    %145 = vector.load %arg15[%c0_64, %c0_65, %c0_66] : memref<2x1x64xf32, #tpu.memory_space<vmem>>, vector<1x1x64xf32>
    %146 = vector.shape_cast %145 : vector<1x1x64xf32> to vector<1x64xf32>
    %cst_67 = arith.constant dense<0.000000e+00> : vector<16xf32>
    %147 = vector.multi_reduction <add>, %142, %cst_67 [1] : vector<16x64xf32> to vector<16xf32>
    %148 = vector.shape_cast %147 : vector<16xf32> to vector<16x1xf32>
    %cst_68 = arith.constant 6.400000e+01 : f32
    %149 = vector.broadcast %cst_68 : f32 to vector<16x1xf32>
    %150 = arith.divf %148, %149 : vector<16x1xf32>
    %151 = vector.broadcast %150 : vector<16x1xf32> to vector<16x64xf32>
    %152 = arith.subf %142, %151 : vector<16x64xf32>
    %153 = arith.mulf %152, %152 : vector<16x64xf32>
    %cst_69 = arith.constant dense<0.000000e+00> : vector<16xf32>
    %154 = vector.multi_reduction <add>, %153, %cst_69 [1] : vector<16x64xf32> to vector<16xf32>
    %155 = vector.shape_cast %154 : vector<16xf32> to vector<16x1xf32>
    %cst_70 = arith.constant 6.400000e+01 : f32
    %156 = vector.broadcast %cst_70 : f32 to vector<16x1xf32>
    %157 = arith.divf %155, %156 : vector<16x1xf32>
    %158 = vector.broadcast %150 : vector<16x1xf32> to vector<16x64xf32>
    %159 = arith.subf %142, %158 : vector<16x64xf32>
    %cst_71 = arith.constant 9.99999974E-6 : f32
    %160 = vector.broadcast %cst_71 : f32 to vector<16x1xf32>
    %161 = arith.addf %157, %160 : vector<16x1xf32>
    %162 = math.rsqrt %161 : vector<16x1xf32>
    %163 = vector.broadcast %162 : vector<16x1xf32> to vector<16x64xf32>
    %164 = arith.mulf %159, %163 : vector<16x64xf32>
    %165 = vector.broadcast %144 : vector<1x64xf32> to vector<16x64xf32>
    %166 = arith.mulf %164, %165 : vector<16x64xf32>
    %167 = vector.broadcast %146 : vector<1x64xf32> to vector<16x64xf32>
    %168 = arith.addf %166, %167 : vector<16x64xf32>
    %169 = arith.truncf %168 : vector<16x64xf32> to vector<16x64xbf16>
    %c1 = arith.constant 1 : index
    %c0_72 = arith.constant 0 : index
    %c0_73 = arith.constant 0 : index
    %170 = vector.load %arg4[%c1, %c0_72, %c0_73] : memref<2x64x192xbf16, #tpu.memory_space<vmem>>, vector<1x64x192xbf16>
    %171 = vector.shape_cast %170 : vector<1x64x192xbf16> to vector<64x192xbf16>
    %cst_74 = arith.constant dense<0.000000e+00> : vector<16x192xf32>
    %172 = tpu.matmul %169, %171, %cst_74 {dimension_numbers = #tpu.dot_dimension_numbers<[1], [0], [0], [1], [0, 0, 1, 1], [], []>} : vector<16x64xbf16>, vector<64x192xbf16>, vector<16x192xf32> -> vector<16x192xf32>
    %c1_75 = arith.constant 1 : index
    %c0_76 = arith.constant 0 : index
    %c0_77 = arith.constant 0 : index
    %173 = vector.load %arg5[%c1_75, %c0_76, %c0_77] : memref<2x1x192xf32, #tpu.memory_space<vmem>>, vector<1x1x192xf32>
    %174 = vector.shape_cast %173 : vector<1x1x192xf32> to vector<1x192xf32>
    %175 = vector.broadcast %174 : vector<1x192xf32> to vector<16x192xf32>
    %176 = arith.addf %172, %175 : vector<16x192xf32>
    %177 = vector.extract_strided_slice %176 {offsets = [0, 0], sizes = [16, 32], strides = [1, 1]} : vector<16x192xf32> to vector<16x32xf32>
    %178 = vector.shape_cast %177 : vector<16x32xf32> to vector<2x8x32xf32>
    %179 = arith.truncf %178 : vector<2x8x32xf32> to vector<2x8x32xbf16>
    %180 = vector.extract_strided_slice %176 {offsets = [0, 32], sizes = [16, 32], strides = [1, 1]} : vector<16x192xf32> to vector<16x32xf32>
    %181 = vector.shape_cast %180 : vector<16x32xf32> to vector<2x8x32xf32>
    %182 = arith.truncf %181 : vector<2x8x32xf32> to vector<2x8x32xbf16>
    %183 = tpu.concatenate %179, %182 in 0 : vector<2x8x32xbf16>, vector<2x8x32xbf16> -> vector<4x8x32xbf16>
    %184 = vector.extract_strided_slice %176 {offsets = [0, 64], sizes = [16, 32], strides = [1, 1]} : vector<16x192xf32> to vector<16x32xf32>
    %185 = vector.shape_cast %184 : vector<16x32xf32> to vector<2x8x32xf32>
    %186 = arith.truncf %185 : vector<2x8x32xf32> to vector<2x8x32xbf16>
    %187 = vector.extract_strided_slice %176 {offsets = [0, 96], sizes = [16, 32], strides = [1, 1]} : vector<16x192xf32> to vector<16x32xf32>
    %188 = vector.shape_cast %187 : vector<16x32xf32> to vector<2x8x32xf32>
    %189 = arith.truncf %188 : vector<2x8x32xf32> to vector<2x8x32xbf16>
    %190 = tpu.concatenate %186, %189 in 0 : vector<2x8x32xbf16>, vector<2x8x32xbf16> -> vector<4x8x32xbf16>
    %191 = vector.extract_strided_slice %176 {offsets = [0, 128], sizes = [16, 32], strides = [1, 1]} : vector<16x192xf32> to vector<16x32xf32>
    %192 = vector.shape_cast %191 : vector<16x32xf32> to vector<2x8x32xf32>
    %193 = arith.truncf %192 : vector<2x8x32xf32> to vector<2x8x32xbf16>
    %194 = vector.extract_strided_slice %176 {offsets = [0, 160], sizes = [16, 32], strides = [1, 1]} : vector<16x192xf32> to vector<16x32xf32>
    %195 = vector.shape_cast %194 : vector<16x32xf32> to vector<2x8x32xf32>
    %196 = arith.truncf %195 : vector<2x8x32xf32> to vector<2x8x32xbf16>
    %197 = tpu.concatenate %193, %196 in 0 : vector<2x8x32xbf16>, vector<2x8x32xbf16> -> vector<4x8x32xbf16>
    "tpu.trace_start"() <{level = 10 : i32, message = "nqd,nkd->nqk"}> : () -> ()
    %cst_78 = arith.constant dense<0.000000e+00> : vector<4x8x8xf32>
    %198 = tpu.matmul %183, %190, %cst_78 {dimension_numbers = #tpu.dot_dimension_numbers<[2], [2], [1], [1], [0, 0, 0, 1, 1, 1], [0], [0]>} : vector<4x8x32xbf16>, vector<4x8x32xbf16>, vector<4x8x8xf32> -> vector<4x8x8xf32>
    "tpu.trace_stop"() : () -> ()
    %199 = vector.broadcast %0 : vector<4x1x8xf32> to vector<4x8x8xf32>
    %200 = arith.addf %198, %199 : vector<4x8x8xf32>
    %cst_79 = arith.constant dense<0xFF800000> : vector<4x8xf32>
    %201 = vector.multi_reduction <maximumf>, %200, %cst_79 [2] : vector<4x8x8xf32> to vector<4x8xf32>
    %202 = vector.shape_cast %201 : vector<4x8xf32> to vector<4x8x1xf32>
    %203 = vector.broadcast %202 : vector<4x8x1xf32> to vector<4x8x8xf32>
    %204 = arith.subf %200, %203 : vector<4x8x8xf32>
    %205 = math.exp %204 : vector<4x8x8xf32>
    %cst_80 = arith.constant dense<0.000000e+00> : vector<4x8xf32>
    %206 = vector.multi_reduction <add>, %205, %cst_80 [2] : vector<4x8x8xf32> to vector<4x8xf32>
    %207 = vector.shape_cast %206 : vector<4x8xf32> to vector<4x8x1xf32>
    %208 = tpu.reciprocal %207 {approx = true} : vector<4x8x1xf32> -> vector<4x8x1xf32>
    %209 = vector.broadcast %208 : vector<4x8x1xf32> to vector<4x8x8xf32>
    %210 = arith.mulf %205, %209 : vector<4x8x8xf32>
    %211 = arith.truncf %210 : vector<4x8x8xf32> to vector<4x8x8xbf16>
    "tpu.trace_start"() <{level = 10 : i32, message = "nqk,nkd->nqd"}> : () -> ()
    %cst_81 = arith.constant dense<0.000000e+00> : vector<4x8x32xf32>
    %212 = tpu.matmul %211, %197, %cst_81 {dimension_numbers = #tpu.dot_dimension_numbers<[2], [1], [1], [2], [0, 0, 0, 1, 1, 2], [0], [0]>} : vector<4x8x8xbf16>, vector<4x8x32xbf16>, vector<4x8x32xf32> -> vector<4x8x32xf32>
    "tpu.trace_stop"() : () -> ()
    %c1_82 = arith.constant 1 : index
    %c0_83 = arith.constant 0 : index
    %c0_84 = arith.constant 0 : index
    %c0_85 = arith.constant 0 : index
    %213 = vector.load %arg6[%c1_82, %c0_83, %c0_84, %c0_85] : memref<2x2x32x64xbf16, #tpu.memory_space<vmem>>, vector<1x2x32x64xbf16>
    %214 = vector.shape_cast %213 : vector<1x2x32x64xbf16> to vector<2x32x64xbf16>
    %c1_86 = arith.constant 1 : index
    %c0_87 = arith.constant 0 : index
    %c0_88 = arith.constant 0 : index
    %215 = vector.load %arg7[%c1_86, %c0_87, %c0_88] : memref<2x1x64xf32, #tpu.memory_space<vmem>>, vector<1x1x64xf32>
    %216 = vector.shape_cast %215 : vector<1x1x64xf32> to vector<1x64xf32>
    %217 = vector.extract_strided_slice %212 {offsets = [0, 0, 0], sizes = [2, 8, 32], strides = [1, 1, 1]} : vector<4x8x32xf32> to vector<2x8x32xf32>
    %218 = vector.shape_cast %217 : vector<2x8x32xf32> to vector<16x32xf32>
    %219 = arith.truncf %218 : vector<16x32xf32> to vector<16x32xbf16>
    %220 = vector.extract_strided_slice %214 {offsets = [0, 0, 0], sizes = [1, 32, 64], strides = [1, 1, 1]} : vector<2x32x64xbf16> to vector<1x32x64xbf16>
    %221 = vector.shape_cast %220 : vector<1x32x64xbf16> to vector<32x64xbf16>
    %cst_89 = arith.constant dense<0.000000e+00> : vector<16x64xf32>
    %222 = tpu.matmul %219, %221, %cst_89 {dimension_numbers = #tpu.dot_dimension_numbers<[1], [0], [0], [1], [0, 0, 1, 1], [], []>} : vector<16x32xbf16>, vector<32x64xbf16>, vector<16x64xf32> -> vector<16x64xf32>
    %223 = vector.broadcast %216 : vector<1x64xf32> to vector<16x64xf32>
    %224 = arith.addf %223, %222 : vector<16x64xf32>
    %225 = vector.extract_strided_slice %212 {offsets = [2, 0, 0], sizes = [2, 8, 32], strides = [1, 1, 1]} : vector<4x8x32xf32> to vector<2x8x32xf32>
    %226 = vector.shape_cast %225 : vector<2x8x32xf32> to vector<16x32xf32>
    %227 = arith.truncf %226 : vector<16x32xf32> to vector<16x32xbf16>
    %228 = vector.extract_strided_slice %214 {offsets = [1, 0, 0], sizes = [1, 32, 64], strides = [1, 1, 1]} : vector<2x32x64xbf16> to vector<1x32x64xbf16>
    %229 = vector.shape_cast %228 : vector<1x32x64xbf16> to vector<32x64xbf16>
    %cst_90 = arith.constant dense<0.000000e+00> : vector<16x64xf32>
    %230 = tpu.matmul %227, %229, %cst_90 {dimension_numbers = #tpu.dot_dimension_numbers<[1], [0], [0], [1], [0, 0, 1, 1], [], []>} : vector<16x32xbf16>, vector<32x64xbf16>, vector<16x64xf32> -> vector<16x64xf32>
    %231 = arith.addf %224, %230 : vector<16x64xf32>
    %232 = arith.addf %168, %231 : vector<16x64xf32>
    %c1_91 = arith.constant 1 : index
    %c0_92 = arith.constant 0 : index
    %c0_93 = arith.constant 0 : index
    %233 = vector.load %arg8[%c1_91, %c0_92, %c0_93] : memref<2x1x64xf32, #tpu.memory_space<vmem>>, vector<1x1x64xf32>
    %234 = vector.shape_cast %233 : vector<1x1x64xf32> to vector<1x64xf32>
    %c1_94 = arith.constant 1 : index
    %c0_95 = arith.constant 0 : index
    %c0_96 = arith.constant 0 : index
    %235 = vector.load %arg9[%c1_94, %c0_95, %c0_96] : memref<2x1x64xf32, #tpu.memory_space<vmem>>, vector<1x1x64xf32>
    %236 = vector.shape_cast %235 : vector<1x1x64xf32> to vector<1x64xf32>
    %cst_97 = arith.constant dense<0.000000e+00> : vector<16xf32>
    %237 = vector.multi_reduction <add>, %232, %cst_97 [1] : vector<16x64xf32> to vector<16xf32>
    %238 = vector.shape_cast %237 : vector<16xf32> to vector<16x1xf32>
    %cst_98 = arith.constant 6.400000e+01 : f32
    %239 = vector.broadcast %cst_98 : f32 to vector<16x1xf32>
    %240 = arith.divf %238, %239 : vector<16x1xf32>
    %241 = vector.broadcast %240 : vector<16x1xf32> to vector<16x64xf32>
    %242 = arith.subf %232, %241 : vector<16x64xf32>
    %243 = arith.mulf %242, %242 : vector<16x64xf32>
    %cst_99 = arith.constant dense<0.000000e+00> : vector<16xf32>
    %244 = vector.multi_reduction <add>, %243, %cst_99 [1] : vector<16x64xf32> to vector<16xf32>
    %245 = vector.shape_cast %244 : vector<16xf32> to vector<16x1xf32>
    %cst_100 = arith.constant 6.400000e+01 : f32
    %246 = vector.broadcast %cst_100 : f32 to vector<16x1xf32>
    %247 = arith.divf %245, %246 : vector<16x1xf32>
    %248 = vector.broadcast %240 : vector<16x1xf32> to vector<16x64xf32>
    %249 = arith.subf %232, %248 : vector<16x64xf32>
    %cst_101 = arith.constant 9.99999974E-6 : f32
    %250 = vector.broadcast %cst_101 : f32 to vector<16x1xf32>
    %251 = arith.addf %247, %250 : vector<16x1xf32>
    %252 = math.rsqrt %251 : vector<16x1xf32>
    %253 = vector.broadcast %252 : vector<16x1xf32> to vector<16x64xf32>
    %254 = arith.mulf %249, %253 : vector<16x64xf32>
    %255 = vector.broadcast %234 : vector<1x64xf32> to vector<16x64xf32>
    %256 = arith.mulf %254, %255 : vector<16x64xf32>
    %257 = vector.broadcast %236 : vector<1x64xf32> to vector<16x64xf32>
    %258 = arith.addf %256, %257 : vector<16x64xf32>
    %259 = arith.truncf %258 : vector<16x64xf32> to vector<16x64xbf16>
    %c1_102 = arith.constant 1 : index
    %c0_103 = arith.constant 0 : index
    %c0_104 = arith.constant 0 : index
    %260 = vector.load %arg10[%c1_102, %c0_103, %c0_104] : memref<2x64x128xbf16, #tpu.memory_space<vmem>>, vector<1x64x128xbf16>
    %261 = vector.shape_cast %260 : vector<1x64x128xbf16> to vector<64x128xbf16>
    %cst_105 = arith.constant dense<0.000000e+00> : vector<16x128xf32>
    %262 = tpu.matmul %259, %261, %cst_105 {dimension_numbers = #tpu.dot_dimension_numbers<[1], [0], [0], [1], [0, 0, 1, 1], [], []>} : vector<16x64xbf16>, vector<64x128xbf16>, vector<16x128xf32> -> vector<16x128xf32>
    %c1_106 = arith.constant 1 : index
    %c0_107 = arith.constant 0 : index
    %c0_108 = arith.constant 0 : index
    %263 = vector.load %arg11[%c1_106, %c0_107, %c0_108] : memref<2x1x128xf32, #tpu.memory_space<vmem>>, vector<1x1x128xf32>
    %264 = vector.shape_cast %263 : vector<1x1x128xf32> to vector<1x128xf32>
    %265 = vector.broadcast %264 : vector<1x128xf32> to vector<16x128xf32>
    %266 = arith.addf %262, %265 : vector<16x128xf32>
    %cst_109 = arith.constant 5.000000e-01 : f32
    %267 = vector.broadcast %cst_109 : f32 to vector<16x128xf32>
    %268 = arith.mulf %267, %266 : vector<16x128xf32>
    %cst_110 = arith.constant 2.000000e+00 : f32
    %269 = math.sqrt %cst_110 : f32
    %cst_111 = arith.constant 1.000000e+00 : f32
    %270 = arith.divf %cst_111, %269 : f32
    %271 = vector.broadcast %270 : f32 to vector<16x128xf32>
    %272 = arith.mulf %266, %271 : vector<16x128xf32>
    %273 = math.erf %272 : vector<16x128xf32>
    %cst_112 = arith.constant 1.000000e+00 : f32
    %274 = vector.broadcast %cst_112 : f32 to vector<16x128xf32>
    %275 = arith.addf %274, %273 : vector<16x128xf32>
    %276 = arith.mulf %268, %275 : vector<16x128xf32>
    %277 = arith.truncf %276 : vector<16x128xf32> to vector<16x128xbf16>
    %c1_113 = arith.constant 1 : index
    %c0_114 = arith.constant 0 : index
    %c0_115 = arith.constant 0 : index
    %278 = vector.load %arg12[%c1_113, %c0_114, %c0_115] : memref<2x128x64xbf16, #tpu.memory_space<vmem>>, vector<1x128x64xbf16>
    %279 = vector.shape_cast %278 : vector<1x128x64xbf16> to vector<128x64xbf16>
    %cst_116 = arith.constant dense<0.000000e+00> : vector<16x64xf32>
    %280 = tpu.matmul %277, %279, %cst_116 {dimension_numbers = #tpu.dot_dimension_numbers<[1], [0], [0], [1], [0, 0, 1, 1], [], []>} : vector<16x128xbf16>, vector<128x64xbf16>, vector<16x64xf32> -> vector<16x64xf32>
    %c1_117 = arith.constant 1 : index
    %c0_118 = arith.constant 0 : index
    %c0_119 = arith.constant 0 : index
    %281 = vector.load %arg13[%c1_117, %c0_118, %c0_119] : memref<2x1x64xf32, #tpu.memory_space<vmem>>, vector<1x1x64xf32>
    %282 = vector.shape_cast %281 : vector<1x1x64xf32> to vector<1x64xf32>
    %283 = vector.broadcast %282 : vector<1x64xf32> to vector<16x64xf32>
    %284 = arith.addf %280, %283 : vector<16x64xf32>
    %285 = arith.addf %258, %284 : vector<16x64xf32>
    %c1_120 = arith.constant 1 : index
    %c0_121 = arith.constant 0 : index
    %c0_122 = arith.constant 0 : index
    %286 = vector.load %arg14[%c1_120, %c0_121, %c0_122] : memref<2x1x64xf32, #tpu.memory_space<vmem>>, vector<1x1x64xf32>
    %287 = vector.shape_cast %286 : vector<1x1x64xf32> to vector<1x64xf32>
    %c1_123 = arith.constant 1 : index
    %c0_124 = arith.constant 0 : index
    %c0_125 = arith.constant 0 : index
    %288 = vector.load %arg15[%c1_123, %c0_124, %c0_125] : memref<2x1x64xf32, #tpu.memory_space<vmem>>, vector<1x1x64xf32>
    %289 = vector.shape_cast %288 : vector<1x1x64xf32> to vector<1x64xf32>
    %cst_126 = arith.constant dense<0.000000e+00> : vector<16xf32>
    %290 = vector.multi_reduction <add>, %285, %cst_126 [1] : vector<16x64xf32> to vector<16xf32>
    %291 = vector.shape_cast %290 : vector<16xf32> to vector<16x1xf32>
    %cst_127 = arith.constant 6.400000e+01 : f32
    %292 = vector.broadcast %cst_127 : f32 to vector<16x1xf32>
    %293 = arith.divf %291, %292 : vector<16x1xf32>
    %294 = vector.broadcast %293 : vector<16x1xf32> to vector<16x64xf32>
    %295 = arith.subf %285, %294 : vector<16x64xf32>
    %296 = arith.mulf %295, %295 : vector<16x64xf32>
    %cst_128 = arith.constant dense<0.000000e+00> : vector<16xf32>
    %297 = vector.multi_reduction <add>, %296, %cst_128 [1] : vector<16x64xf32> to vector<16xf32>
    %298 = vector.shape_cast %297 : vector<16xf32> to vector<16x1xf32>
    %cst_129 = arith.constant 6.400000e+01 : f32
    %299 = vector.broadcast %cst_129 : f32 to vector<16x1xf32>
    %300 = arith.divf %298, %299 : vector<16x1xf32>
    %301 = vector.broadcast %293 : vector<16x1xf32> to vector<16x64xf32>
    %302 = arith.subf %285, %301 : vector<16x64xf32>
    %cst_130 = arith.constant 9.99999974E-6 : f32
    %303 = vector.broadcast %cst_130 : f32 to vector<16x1xf32>
    %304 = arith.addf %300, %303 : vector<16x1xf32>
    %305 = math.rsqrt %304 : vector<16x1xf32>
    %306 = vector.broadcast %305 : vector<16x1xf32> to vector<16x64xf32>
    %307 = arith.mulf %302, %306 : vector<16x64xf32>
    %308 = vector.broadcast %287 : vector<1x64xf32> to vector<16x64xf32>
    %309 = arith.mulf %307, %308 : vector<16x64xf32>
    %310 = vector.broadcast %289 : vector<1x64xf32> to vector<16x64xf32>
    %311 = arith.addf %309, %310 : vector<16x64xf32>
    %312 = vector.shape_cast %311 : vector<16x64xf32> to vector<2x8x64xf32>
    %313 = vector.extract_strided_slice %312 {offsets = [0, 0, 0], sizes = [2, 1, 64], strides = [1, 1, 1]} : vector<2x8x64xf32> to vector<2x1x64xf32>
    %314 = vector.shape_cast %313 : vector<2x1x64xf32> to vector<2x64xf32>
    %315 = arith.truncf %314 : vector<2x64xf32> to vector<2x64xbf16>
    %c0_131 = arith.constant 0 : index
    %c0_132 = arith.constant 0 : index
    %316 = vector.load %arg16[%c0_131, %c0_132] : memref<64x64xbf16, #tpu.memory_space<vmem>>, vector<64x64xbf16>
    %cst_133 = arith.constant dense<0.000000e+00> : vector<2x64xf32>
    %317 = tpu.matmul %315, %316, %cst_133 {dimension_numbers = #tpu.dot_dimension_numbers<[1], [0], [0], [1], [0, 0, 1, 1], [], []>} : vector<2x64xbf16>, vector<64x64xbf16>, vector<2x64xf32> -> vector<2x64xf32>
    %c0_134 = arith.constant 0 : index
    %c0_135 = arith.constant 0 : index
    %318 = vector.load %arg17[%c0_134, %c0_135] : memref<1x64xf32, #tpu.memory_space<vmem>>, vector<1x64xf32>
    %319 = vector.broadcast %318 : vector<1x64xf32> to vector<2x64xf32>
    %320 = arith.addf %317, %319 : vector<2x64xf32>
    %321 = math.tanh %320 : vector<2x64xf32>
    %322 = arith.truncf %321 : vector<2x64xf32> to vector<2x64xbf16>
    %c0_136 = arith.constant 0 : index
    %c0_137 = arith.constant 0 : index
    %323 = vector.load %arg18[%c0_136, %c0_137] : memref<64x2xbf16, #tpu.memory_space<vmem>>, vector<64x2xbf16>
    %cst_138 = arith.constant dense<0.000000e+00> : vector<2x2xf32>
    %324 = tpu.matmul %322, %323, %cst_138 {dimension_numbers = #tpu.dot_dimension_numbers<[1], [0], [0], [1], [0, 0, 1, 1], [], []>} : vector<2x64xbf16>, vector<64x2xbf16>, vector<2x2xf32> -> vector<2x2xf32>
    %c0_139 = arith.constant 0 : index
    %c0_140 = arith.constant 0 : index
    %325 = vector.load %arg19[%c0_139, %c0_140] : memref<1x2xf32, #tpu.memory_space<vmem>>, vector<1x2xf32>
    %326 = vector.broadcast %325 : vector<1x2xf32> to vector<2x2xf32>
    %327 = arith.addf %324, %326 : vector<2x2xf32>
    %c0_141 = arith.constant 0 : index
    %c0_142 = arith.constant 0 : index
    %328 = vector.load %arg20[%c0_141, %c0_142] : memref<2x2xf32, #tpu.memory_space<vmem>>, vector<2x2xf32>
    tpu.vector_store %arg20[%c0_141, %c0_142], %327 {strides = array<i32>} : memref<2x2xf32, #tpu.memory_space<vmem>>, vector<2x2xf32>,
    return
  }
}

</mosaic_0001>

<llo_original>
// kernel: roberta_forward.1
$region0: #{roberta_forward.1}
  #allocation0 [shape = 'u32[]', space=smem, size = 0x4, offset = 0x4, fixed_abs, tag = 'smem constant byte address 0x4 - core index']
  #allocation1 [shape = 'u32[144,128]{1,0:T(1,128)}', space=vmem, size = 0x12000, scoped, tag = 'internal scratch']
  %s0 = inlined_call_operand.vmem [shape: f32[16,64], index: 0, kind: input, shape index: {}]
  %s1 = inlined_call_operand.vmem [shape: f32[4,1,8], index: 1, kind: input, shape index: {}]
  %s2 = inlined_call_operand.vmem [shape: f32[1,64], index: 2, kind: input, shape index: {}]
  %s3 = inlined_call_operand.vmem [shape: f32[1,64], index: 3, kind: input, shape index: {}]
  %s4 = inlined_call_operand.vmem [shape: bf16[2,64,192], index: 4, kind: input, shape index: {}]
  %s5 = inlined_call_operand.vmem [shape: f32[2,1,192], index: 5, kind: input, shape index: {}]
  %s6 = inlined_call_operand.vmem [shape: bf16[2,2,32,64], index: 6, kind: input, shape index: {}]
  %s7 = inlined_call_operand.vmem [shape: f32[2,1,64], index: 7, kind: input, shape index: {}]
  %s8 = inlined_call_operand.vmem [shape: f32[2,1,64], index: 8, kind: input, shape index: {}]
  %s9 = inlined_call_operand.vmem [shape: f32[2,1,64], index: 9, kind: input, shape index: {}]
  %s10 = inlined_call_operand.vmem [shape: bf16[2,64,128], index: 10, kind: input, shape index: {}]
  %s11 = inlined_call_operand.vmem [shape: f32[2,1,128], index: 11, kind: input, shape index: {}]
  %s12 = inlined_call_operand.vmem [shape: bf16[2,128,64], index: 12, kind: input, shape index: {}]
  %s13 = inlined_call_operand.vmem [shape: f32[2,1,64], index: 13, kind: input, shape index: {}]
  %s14 = inlined_call_operand.vmem [shape: f32[2,1,64], index: 14, kind: input, shape index: {}]
  %s15 = inlined_call_operand.vmem [shape: f32[2,1,64], index: 15, kind: input, shape index: {}]
  %s16 = inlined_call_operand.vmem [shape: bf16[64,64], index: 16, kind: input, shape index: {}]
  %s17 = inlined_call_operand.vmem [shape: f32[1,64], index: 17, kind: input, shape index: {}]
  %s18 = inlined_call_operand.vmem [shape: bf16[64,2], index: 18, kind: input, shape index: {}]
  %s19 = inlined_call_operand.vmem [shape: f32[1,2], index: 19, kind: input, shape index: {}]
  %s20 = inlined_call_operand.hbm [shape: f32[2,2], index: 20, kind: output, shape index: {}]
  %s21 = sld [smem:[#allocation0]]
  $region90: #{roberta_forward.1} parent=0
    _
  %s23 = ssub.s32 1, %s21
  %s24 = scalar_select 0, %s23, %s21
  $region1: #{roberta_forward.1} parent=0
    #allocation2 [shape = 'u8[1024]{0}', space=vmem, size = 0x400, scoped, tag = 'output window, operand 0, single buffered']
    #allocation3 [shape = 's32[1]{0}', space=sflag, size = 0x4, scoped, tag = 'scoped memory for roberta_forward.1']
    %25 = vsyncpa [#allocation3], 0
    // Predicated region
    $region2: #{roberta_forward.1} parent=1 // pred_check
      _
    $region3: #{roberta_forward.1} parent=1 // pred_check_branch
      %27 = sbr.rel (0) target = $region5
    $region4: #{roberta_forward.1} parent=1 // pred_region
      _
    $region5: #{roberta_forward.1} parent=1 // pred_fallthru
      _
    // Predicated region
    $region6: #{roberta_forward.1} parent=1 // pred_check
      _
    $region7: #{roberta_forward.1} parent=1 // pred_check_branch
      %29 = sbr.rel (0) target = $region9
    $region8: #{roberta_forward.1} parent=1 // pred_region
      _
    $region9: #{roberta_forward.1} parent=1 // pred_fallthru
      _
    // Predicated region
    $region10: #{roberta_forward.1} parent=1 // pred_check
      _
    $region11: #{roberta_forward.1} parent=1 // pred_check_branch
      %31 = sbr.rel (0) target = $region13
    $region12: #{roberta_forward.1} parent=1 // pred_region
      _
    $region13: #{roberta_forward.1} parent=1 // pred_fallthru
      _
    // Predicated region
    $region14: #{roberta_forward.1} parent=1 // pred_check
      _
    $region15: #{roberta_forward.1} parent=1 // pred_check_branch
      %33 = sbr.rel (0) target = $region17
    $region16: #{roberta_forward.1} parent=1 // pred_region
      _
    $region17: #{roberta_forward.1} parent=1 // pred_fallthru
      _
    // Predicated region
    $region18: #{roberta_forward.1} parent=1 // pred_check
      _
    $region19: #{roberta_forward.1} parent=1 // pred_check_branch
      %35 = sbr.rel (0) target = $region21
    $region20: #{roberta_forward.1} parent=1 // pred_region
      _
    $region21: #{roberta_forward.1} parent=1 // pred_fallthru
      _
    // Predicated region
    $region22: #{roberta_forward.1} parent=1 // pred_check
      _
    $region23: #{roberta_forward.1} parent=1 // pred_check_branch
      %37 = sbr.rel (0) target = $region25
    $region24: #{roberta_forward.1} parent=1 // pred_region
      _
    $region25: #{roberta_forward.1} parent=1 // pred_fallthru
      _
    // Predicated region
    $region26: #{roberta_forward.1} parent=1 // pred_check
      _
    $region27: #{roberta_forward.1} parent=1 // pred_check_branch
      %39 = sbr.rel (0) target = $region29
    $region28: #{roberta_forward.1} parent=1 // pred_region
      _
    $region29: #{roberta_forward.1} parent=1 // pred_fallthru
      _
    // Predicated region
    $region30: #{roberta_forward.1} parent=1 // pred_check
      _
    $region31: #{roberta_forward.1} parent=1 // pred_check_branch
      %41 = sbr.rel (0) target = $region33
    $region32: #{roberta_forward.1} parent=1 // pred_region
      _
    $region33: #{roberta_forward.1} parent=1 // pred_fallthru
      _
    // Predicated region
    $region34: #{roberta_forward.1} parent=1 // pred_check
      _
    $region35: #{roberta_forward.1} parent=1 // pred_check_branch
      %43 = sbr.rel (0) target = $region37
    $region36: #{roberta_forward.1} parent=1 // pred_region
      _
    $region37: #{roberta_forward.1} parent=1 // pred_fallthru
      _
    // Predicated region
    $region38: #{roberta_forward.1} parent=1 // pred_check
      _
    $region39: #{roberta_forward.1} parent=1 // pred_check_branch
      %45 = sbr.rel (0) target = $region41
    $region40: #{roberta_forward.1} parent=1 // pred_region
      _
    $region41: #{roberta_forward.1} parent=1 // pred_fallthru
      _
    // Predicated region
    $region42: #{roberta_forward.1} parent=1 // pred_check
      _
    $region43: #{roberta_forward.1} parent=1 // pred_check_branch
      %47 = sbr.rel (0) target = $region45
    $region44: #{roberta_forward.1} parent=1 // pred_region
      _
    $region45: #{roberta_forward.1} parent=1 // pred_fallthru
      _
    // Predicated region
    $region46: #{roberta_forward.1} parent=1 // pred_check
      _
    $region47: #{roberta_forward.1} parent=1 // pred_check_branch
      %49 = sbr.rel (0) target = $region49
    $region48: #{roberta_forward.1} parent=1 // pred_region
      _
    $region49: #{roberta_forward.1} parent=1 // pred_fallthru
      _
    // Predicated region
    $region50: #{roberta_forward.1} parent=1 // pred_check
      _
    $region51: #{roberta_forward.1} parent=1 // pred_check_branch
      %51 = sbr.rel (0) target = $region53
    $region52: #{roberta_forward.1} parent=1 // pred_region
      _
    $region53: #{roberta_forward.1} parent=1 // pred_fallthru
      _
    // Predicated region
    $region54: #{roberta_forward.1} parent=1 // pred_check
      _
    $region55: #{roberta_forward.1} parent=1 // pred_check_branch
      %53 = sbr.rel (0) target = $region57
    $region56: #{roberta_forward.1} parent=1 // pred_region
      _
    $region57: #{roberta_forward.1} parent=1 // pred_fallthru
      _
    // Predicated region
    $region58: #{roberta_forward.1} parent=1 // pred_check
      _
    $region59: #{roberta_forward.1} parent=1 // pred_check_branch
      %55 = sbr.rel (0) target = $region61
    $region60: #{roberta_forward.1} parent=1 // pred_region
      _
    $region61: #{roberta_forward.1} parent=1 // pred_fallthru
      _
    // Predicated region
    $region62: #{roberta_forward.1} parent=1 // pred_check
      _
    $region63: #{roberta_forward.1} parent=1 // pred_check_branch
      %57 = sbr.rel (0) target = $region65
    $region64: #{roberta_forward.1} parent=1 // pred_region
      _
    $region65: #{roberta_forward.1} parent=1 // pred_fallthru
      _
    // Predicated region
    $region66: #{roberta_forward.1} parent=1 // pred_check
      _
    $region67: #{roberta_forward.1} parent=1 // pred_check_branch
      %59 = sbr.rel (0) target = $region69
    $region68: #{roberta_forward.1} parent=1 // pred_region
      _
    $region69: #{roberta_forward.1} parent=1 // pred_fallthru
      _
    // Predicated region
    $region70: #{roberta_forward.1} parent=1 // pred_check
      _
    $region71: #{roberta_forward.1} parent=1 // pred_check_branch
      %61 = sbr.rel (0) target = $region73
    $region72: #{roberta_forward.1} parent=1 // pred_region
      _
    $region73: #{roberta_forward.1} parent=1 // pred_fallthru
      _
    // Predicated region
    $region74: #{roberta_forward.1} parent=1 // pred_check
      _
    $region75: #{roberta_forward.1} parent=1 // pred_check_branch
      %63 = sbr.rel (0) target = $region77
    $region76: #{roberta_forward.1} parent=1 // pred_region
      _
    $region77: #{roberta_forward.1} parent=1 // pred_fallthru
      _
    // Predicated region
    $region78: #{roberta_forward.1} parent=1 // pred_check
      _
    $region79: #{roberta_forward.1} parent=1 // pred_check_branch
      %65 = sbr.rel (0) target = $region81
    $region80: #{roberta_forward.1} parent=1 // pred_region
      _
    $region81: #{roberta_forward.1} parent=1 // pred_fallthru
      _
    %v67 = vld [vmem:[%s1] sm:$0x1]
    %v68 = vld [vmem:[%s1 + $0x1] sm:$0x1]
    %v69 = vld [vmem:[%s1 + $0x2] sm:$0x1]
    %v70 = vld [vmem:[%s1 + $0x3] sm:$0x1]
    %v71 = vld [vmem:[%s0] sm:$0xff]
    %v72 = vld [vmem:[%s0 + $0x8] sm:$0xff]
    %v73 = vld [vmem:[%s2] sm:$0x1]
    %v74 = vld [vmem:[%s3] sm:$0x1]
    %vm75 = vcmask 523264
    %v76 = vsel %vm75, %v71, 0.0
    %77 = vadd.xlane.f32.xlu0 %v76
    %v78 = vpop.xlane.xlu0 %77
    %v79 = vsel %vm75, %v72, 0.0
    %80 = vadd.xlane.f32.xlu0 %v79
    %v81 = vpop.xlane.xlu0 %80
    %v82 = vrcp.pop 64.0
    %v83 = vmul.f32 %v78, %v82
    %v84 = vmul.f32 %v81, %v82
    %v85 = vsub.f32 %v71, %v83
    %v86 = vsub.f32 %v72, %v84
    %v87 = vmul.f32 %v85, %v85
    %v88 = vmul.f32 %v86, %v86
    %v89 = vsel %vm75, %v87, 0.0
    %90 = vadd.xlane.f32.xlu0 %v89
    %v91 = vpop.xlane.xlu0 %90
    %v92 = vsel %vm75, %v88, 0.0
    %93 = vadd.xlane.f32.xlu0 %v92
    %v94 = vpop.xlane.xlu0 %93
    %v95 = vmul.f32 %v91, %v82
    %v96 = vmul.f32 %v94, %v82
    %v97 = vadd.f32 %v95, 1e-05
    %v98 = vadd.f32 %v96, 1e-05
    %v99 = vrsqrt.pop %v97
    %v100 = vrsqrt.pop %v98
    %v101 = vmul.f32 %v85, %v99
    %v102 = vmul.f32 %v86, %v100
    %v104 = vlaneseq
    %v105 = vshrl.u32 %v104, 7
    %v106 = vsub.s32 0, %v105
    %v107 = vrot.slane %v73, %v106
    %v109 = vmul.f32 %v101, %v107
    %v110 = vmul.f32 %v102, %v107
    %v112 = vlaneseq
    %v113 = vshrl.u32 %v112, 7
    %v114 = vsub.s32 0, %v113
    %v115 = vrot.slane %v74, %v114
    %v117 = vadd.f32 %v109, %v115
    %v118 = vadd.f32 %v110, %v115
    %v119 = vpack.c.bf16 %v118, %v117
    %v120 = vld [vmem:[%s4] sm:$0xff]
    %v121 = vld [vmem:[%s4 + $0x8] sm:$0xff]
    %v122 = vld [vmem:[%s4 + $0x10] sm:$0xff]
    %v123 = vld [vmem:[%s4 + $0x18] sm:$0xff]
    %v124 = vld [vmem:[%s4 + $0x20] sm:$0xff]
    %v125 = vld [vmem:[%s4 + $0x28] sm:$0xff]
    %v126 = vld [vmem:[%s4 + $0x30] sm:$0xff]
    %v127 = vld [vmem:[%s4 + $0x38] sm:$0xff]
    %v128 = vld [vmem:[%s5] sm:$0x3]
    %v130 = vlaneseq
    %v131 = vshrl.u32 %v130, 7
    %v132 = vsub.s32 0, %v131
    %v133 = vrot.slane %v128, %v132
    %v134 = vlaneseq
    %v135 = vshrl.u32 %v134, 7
    %v136 = vsub.s32 1, %v135
    %v137 = vrot.slane %v128, %v136
    %v148 = vunpack.c.l.b16 %v120
    %v149 = vunpack.c.h.b16 %v120
    %v150 = vunpack.c.l.b16 %v121
    %v151 = vunpack.c.h.b16 %v121
    %v152 = vunpack.c.l.b16 %v122
    %v153 = vunpack.c.h.b16 %v122
    %v154 = vunpack.c.l.b16 %v123
    %v155 = vunpack.c.h.b16 %v123
    %v156 = vunpack.c.l.b16 %v124
    %v157 = vunpack.c.h.b16 %v124
    %v158 = vunpack.c.l.b16 %v125
    %v159 = vunpack.c.h.b16 %v125
    %v160 = vunpack.c.l.b16 %v126
    %v161 = vunpack.c.h.b16 %v126
    %v162 = vunpack.c.l.b16 %v127
    %v163 = vunpack.c.h.b16 %v127
    %v164 = vpack.c.b16 %v150, %v148
    %v165 = vpack.c.b16 %v151, %v149
    %v166 = vpack.c.b16 %v154, %v152
    %v167 = vpack.c.b16 %v155, %v153
    %v168 = vpack.c.b16 %v158, %v156
    %v169 = vpack.c.b16 %v159, %v157
    %v170 = vpack.c.b16 %v162, %v160
    %v171 = vpack.c.b16 %v163, %v161
    %v181 = vsel %vm75, %v119, 0
    %183 = vmatprep.subr.bf16.mxu0 %v165
    %184 = vmatpush1.bf16.msra.mxu0 %v164
    %185 = vmatprep.subr.bf16.mxu0 %v167
    %186 = vmatpush1.bf16.msra.mxu0 %v166
    %187 = vmatprep.subr.bf16.mxu0 %v169
    %188 = vmatpush1.bf16.msra.mxu0 %v168
    %189 = vmatprep.subr.bf16.mxu0 %v171
    %190 = vmatpush1.bf16.msra.mxu0 %v170
    %191 = vmatprep.subr.bf16.mxu0 0
    %192 = vmatpush1.bf16.msra.mxu0 0
    %193 = vmatprep.subr.bf16.mxu0 0
    %194 = vmatpush1.bf16.msra.mxu0 0
    %195 = vmatprep.subr.bf16.mxu0 0
    %196 = vmatpush1.bf16.msra.mxu0 0
    %197 = vmatprep.subr.bf16.mxu0 0
    %198 = vmatpush1.bf16.msra.mxu0 0
    %199 = vmatprep.subr.bf16.mxu0 0
    %200 = vmatpush1.bf16.msra.mxu0 0
    %201 = vmatprep.subr.bf16.mxu0 0
    %202 = vmatpush1.bf16.msra.mxu0 0
    %203 = vmatprep.subr.bf16.mxu0 0
    %204 = vmatpush1.bf16.msra.mxu0 0
    %205 = vmatprep.subr.bf16.mxu0 0
    %206 = vmatpush1.bf16.msra.mxu0 0
    %207 = vmatprep.subr.bf16.mxu0 0
    %208 = vmatpush1.bf16.msra.mxu0 0
    %209 = vmatprep.subr.bf16.mxu0 0
    %210 = vmatpush1.bf16.msra.mxu0 0
    %211 = vmatprep.subr.bf16.mxu0 0
    %212 = vmatpush1.bf16.msra.mxu0 0
    %213 = vmatprep.subr.bf16.mxu0 0
    %214 = vmatpush1.bf16.msra.mxu0 0
    %215 = vmatprep.mubr.bf16.mxu0 0
    %216 = vmatmul.mubr.bf16.gmra.mrb[0].mxu0 %v181
    %v217 = vpop.f32.mrb[0].mxu0
    %v218 = vadd.f32 %v133, %v217
    %v219 = vpop.f32.mrb[0].mxu0
    %v220 = vadd.f32 %v137, %v219
    %v221 = vpop.f32.mrb[0].mxu0
    %v222 = vadd.f32 %v133, %v221
    %v223 = vpop.f32.mrb[0].mxu0
    %v224 = vadd.f32 %v137, %v223
    %225 = vdwg.mxu0
    %v226 = vpack.c.bf16 %v218, %v218
    %v227 = vpack.c.bf16 %v222, %v222
    %230 = vrot.lane.b32.xlu0 %v226, 96
    %v231 = vpop.permute.xlu0 %230
    %232 = vrot.lane.b32.xlu0 %v227, 96
    %v233 = vpop.permute.xlu0 %232
    %v234 = vpack.c.bf16 %v220, %v220
    %v235 = vpack.c.bf16 %v224, %v224
    %238 = vrot.lane.b32.xlu0 %v234, 96
    %v239 = vpop.permute.xlu0 %238
    %240 = vrot.lane.b32.xlu0 %v235, 96
    %v241 = vpop.permute.xlu0 %240
    %v246 = vlaneseq
    %v247 = vshrl.u32 %v246, 7
    %v248 = vsub.s32 0, %v247
    %v249 = vrot.slane %v67, %v248
    %v250 = vlaneseq
    %v251 = vshrl.u32 %v250, 7
    %v252 = vsub.s32 0, %v251
    %v253 = vrot.slane %v68, %v252
    %v254 = vlaneseq
    %v255 = vshrl.u32 %v254, 7
    %v256 = vsub.s32 0, %v255
    %v257 = vrot.slane %v69, %v256
    %v258 = vlaneseq
    %v259 = vshrl.u32 %v258, 7
    %v260 = vsub.s32 0, %v259
    %v261 = vrot.slane %v70, %v260
    %266 = vrot.lane.b32.xlu0 %v226, 64
    %v267 = vpop.permute.xlu0 %266
    %vm268 = vcmask 261120
    %v270 = vsel %vm268, %v226, 0
    %v273 = vsel %vm268, %v267, 0
    %275 = vmatprep.subr.bf16.mxu0 0
    %276 = vmatpush1.bf16.xpose.msra.mxu0 %v273
    %277 = vmatprep.subr.bf16.mxu0 0
    %278 = vmatpush1.bf16.xpose.msra.mxu0 0
    %279 = vmatprep.subr.bf16.mxu0 0
    %280 = vmatpush1.bf16.xpose.msra.mxu0 0
    %281 = vmatprep.subr.bf16.mxu0 0
    %282 = vmatpush1.bf16.xpose.msra.mxu0 0
    %283 = vmatprep.subr.bf16.mxu0 0
    %284 = vmatpush1.bf16.xpose.msra.mxu0 0
    %285 = vmatprep.subr.bf16.mxu0 0
    %286 = vmatpush1.bf16.xpose.msra.mxu0 0
    %287 = vmatprep.subr.bf16.mxu0 0
    %288 = vmatpush1.bf16.xpose.msra.mxu0 0
    %289 = vmatprep.subr.bf16.mxu0 0
    %290 = vmatpush1.bf16.xpose.msra.mxu0 0
    %291 = vmatprep.subr.bf16.mxu0 0
    %292 = vmatpush1.bf16.xpose.msra.mxu0 0
    %293 = vmatprep.subr.bf16.mxu0 0
    %294 = vmatpush1.bf16.xpose.msra.mxu0 0
    %295 = vmatprep.subr.bf16.mxu0 0
    %296 = vmatpush1.bf16.xpose.msra.mxu0 0
    %297 = vmatprep.subr.bf16.mxu0 0
    %298 = vmatpush1.bf16.xpose.msra.mxu0 0
    %299 = vmatprep.subr.bf16.mxu0 0
    %300 = vmatpush1.bf16.xpose.msra.mxu0 0
    %301 = vmatprep.subr.bf16.mxu0 0
    %302 = vmatpush1.bf16.xpose.msra.mxu0 0
    %303 = vmatprep.subr.bf16.mxu0 0
    %304 = vmatpush1.bf16.xpose.msra.mxu0 0
    %305 = vmatprep.subr.bf16.mxu0 0
    %306 = vmatpush1.bf16.xpose.msra.mxu0 0
    %307 = vmatprep.mubr.bf16.mxu0 0
    %308 = vmatmul.mubr.bf16.gmra.mrb[0].mxu0 %v270
    %v309 = vpop.f32.mrb[0].mxu0
    %v310 = vadd.f32 %v249, %v309
    %v311 = vpop.f32.mrb[0].mxu0
    %v312 = vpop.f32.mrb[0].mxu0
    %v313 = vpop.f32.mrb[0].mxu0
    %314 = vdwg.mxu0
    %315 = vrot.lane.b32.xlu0 %v227, 64
    %v316 = vpop.permute.xlu0 %315
    %v318 = vsel %vm268, %v227, 0
    %v321 = vsel %vm268, %v316, 0
    %323 = vmatprep.subr.bf16.mxu0 0
    %324 = vmatpush1.bf16.xpose.msra.mxu0 %v321
    %325 = vmatprep.subr.bf16.mxu0 0
    %326 = vmatpush1.bf16.xpose.msra.mxu0 0
    %327 = vmatprep.subr.bf16.mxu0 0
    %328 = vmatpush1.bf16.xpose.msra.mxu0 0
    %329 = vmatprep.subr.bf16.mxu0 0
    %330 = vmatpush1.bf16.xpose.msra.mxu0 0
    %331 = vmatprep.subr.bf16.mxu0 0
    %332 = vmatpush1.bf16.xpose.msra.mxu0 0
    %333 = vmatprep.subr.bf16.mxu0 0
    %334 = vmatpush1.bf16.xpose.msra.mxu0 0
    %335 = vmatprep.subr.bf16.mxu0 0
    %336 = vmatpush1.bf16.xpose.msra.mxu0 0
    %337 = vmatprep.subr.bf16.mxu0 0
    %338 = vmatpush1.bf16.xpose.msra.mxu0 0
    %339 = vmatprep.subr.bf16.mxu0 0
    %340 = vmatpush1.bf16.xpose.msra.mxu0 0
    %341 = vmatprep.subr.bf16.mxu0 0
    %342 = vmatpush1.bf16.xpose.msra.mxu0 0
    %343 = vmatprep.subr.bf16.mxu0 0
    %344 = vmatpush1.bf16.xpose.msra.mxu0 0
    %345 = vmatprep.subr.bf16.mxu0 0
    %346 = vmatpush1.bf16.xpose.msra.mxu0 0
    %347 = vmatprep.subr.bf16.mxu0 0
    %348 = vmatpush1.bf16.xpose.msra.mxu0 0
    %349 = vmatprep.subr.bf16.mxu0 0
    %350 = vmatpush1.bf16.xpose.msra.mxu0 0
    %351 = vmatprep.subr.bf16.mxu0 0
    %352 = vmatpush1.bf16.xpose.msra.mxu0 0
    %353 = vmatprep.subr.bf16.mxu0 0
    %354 = vmatpush1.bf16.xpose.msra.mxu0 0
    %355 = vmatprep.mubr.bf16.mxu0 0
    %356 = vmatmul.mubr.bf16.gmra.mrb[0].mxu0 %v318
    %v357 = vpop.f32.mrb[0].mxu0
    %v358 = vadd.f32 %v253, %v357
    %v359 = vpop.f32.mrb[0].mxu0
    %v360 = vpop.f32.mrb[0].mxu0
    %v361 = vpop.f32.mrb[0].mxu0
    %362 = vdwg.mxu0
    %363 = vrot.lane.b32.xlu0 %v231, 64
    %v364 = vpop.permute.xlu0 %363
    %v366 = vsel %vm268, %v231, 0
    %v369 = vsel %vm268, %v364, 0
    %371 = vmatprep.subr.bf16.mxu0 0
    %372 = vmatpush1.bf16.xpose.msra.mxu0 %v369
    %373 = vmatprep.subr.bf16.mxu0 0
    %374 = vmatpush1.bf16.xpose.msra.mxu0 0
    %375 = vmatprep.subr.bf16.mxu0 0
    %376 = vmatpush1.bf16.xpose.msra.mxu0 0
    %377 = vmatprep.subr.bf16.mxu0 0
    %378 = vmatpush1.bf16.xpose.msra.mxu0 0
    %379 = vmatprep.subr.bf16.mxu0 0
    %380 = vmatpush1.bf16.xpose.msra.mxu0 0
    %381 = vmatprep.subr.bf16.mxu0 0
    %382 = vmatpush1.bf16.xpose.msra.mxu0 0
    %383 = vmatprep.subr.bf16.mxu0 0
    %384 = vmatpush1.bf16.xpose.msra.mxu0 0
    %385 = vmatprep.subr.bf16.mxu0 0
    %386 = vmatpush1.bf16.xpose.msra.mxu0 0
    %387 = vmatprep.subr.bf16.mxu0 0
    %388 = vmatpush1.bf16.xpose.msra.mxu0 0
    %389 = vmatprep.subr.bf16.mxu0 0
    %390 = vmatpush1.bf16.xpose.msra.mxu0 0
    %391 = vmatprep.subr.bf16.mxu0 0
    %392 = vmatpush1.bf16.xpose.msra.mxu0 0
    %393 = vmatprep.subr.bf16.mxu0 0
    %394 = vmatpush1.bf16.xpose.msra.mxu0 0
    %395 = vmatprep.subr.bf16.mxu0 0
    %396 = vmatpush1.bf16.xpose.msra.mxu0 0
    %397 = vmatprep.subr.bf16.mxu0 0
    %398 = vmatpush1.bf16.xpose.msra.mxu0 0
    %399 = vmatprep.subr.bf16.mxu0 0
    %400 = vmatpush1.bf16.xpose.msra.mxu0 0
    %401 = vmatprep.subr.bf16.mxu0 0
    %402 = vmatpush1.bf16.xpose.msra.mxu0 0
    %403 = vmatprep.mubr.bf16.mxu0 0
    %404 = vmatmul.mubr.bf16.gmra.mrb[0].mxu0 %v366
    %v405 = vpop.f32.mrb[0].mxu0
    %v406 = vadd.f32 %v257, %v405
    %v407 = vpop.f32.mrb[0].mxu0
    %v408 = vpop.f32.mrb[0].mxu0
    %v409 = vpop.f32.mrb[0].mxu0
    %410 = vdwg.mxu0
    %411 = vrot.lane.b32.xlu0 %v233, 64
    %v412 = vpop.permute.xlu0 %411
    %v414 = vsel %vm268, %v233, 0
    %v417 = vsel %vm268, %v412, 0
    %419 = vmatprep.subr.bf16.mxu0 0
    %420 = vmatpush1.bf16.xpose.msra.mxu0 %v417
    %421 = vmatprep.subr.bf16.mxu0 0
    %422 = vmatpush1.bf16.xpose.msra.mxu0 0
    %423 = vmatprep.subr.bf16.mxu0 0
    %424 = vmatpush1.bf16.xpose.msra.mxu0 0
    %425 = vmatprep.subr.bf16.mxu0 0
    %426 = vmatpush1.bf16.xpose.msra.mxu0 0
    %427 = vmatprep.subr.bf16.mxu0 0
    %428 = vmatpush1.bf16.xpose.msra.mxu0 0
    %429 = vmatprep.subr.bf16.mxu0 0
    %430 = vmatpush1.bf16.xpose.msra.mxu0 0
    %431 = vmatprep.subr.bf16.mxu0 0
    %432 = vmatpush1.bf16.xpose.msra.mxu0 0
    %433 = vmatprep.subr.bf16.mxu0 0
    %434 = vmatpush1.bf16.xpose.msra.mxu0 0
    %435 = vmatprep.subr.bf16.mxu0 0
    %436 = vmatpush1.bf16.xpose.msra.mxu0 0
    %437 = vmatprep.subr.bf16.mxu0 0
    %438 = vmatpush1.bf16.xpose.msra.mxu0 0
    %439 = vmatprep.subr.bf16.mxu0 0
    %440 = vmatpush1.bf16.xpose.msra.mxu0 0
    %441 = vmatprep.subr.bf16.mxu0 0
    %442 = vmatpush1.bf16.xpose.msra.mxu0 0
    %443 = vmatprep.subr.bf16.mxu0 0
    %444 = vmatpush1.bf16.xpose.msra.mxu0 0
    %445 = vmatprep.subr.bf16.mxu0 0
    %446 = vmatpush1.bf16.xpose.msra.mxu0 0
    %447 = vmatprep.subr.bf16.mxu0 0
    %448 = vmatpush1.bf16.xpose.msra.mxu0 0
    %449 = vmatprep.subr.bf16.mxu0 0
    %450 = vmatpush1.bf16.xpose.msra.mxu0 0
    %451 = vmatprep.mubr.bf16.mxu0 0
    %452 = vmatmul.mubr.bf16.gmra.mrb[0].mxu0 %v414
    %v453 = vpop.f32.mrb[0].mxu0
    %v454 = vadd.f32 %v261, %v453
    %v455 = vpop.f32.mrb[0].mxu0
    %v456 = vpop.f32.mrb[0].mxu0
    %v457 = vpop.f32.mrb[0].mxu0
    %458 = vdwg.mxu0
    %vm459 = vcmask 64512
    %v460 = vsel %vm459, %v310, -inf
    %461 = vmax.xlane.f32.xlu0 %v460
    %v462 = vpop.xlane.xlu0 %461
    %v463 = vsel %vm459, %v358, -inf
    %464 = vmax.xlane.f32.xlu0 %v463
    %v465 = vpop.xlane.xlu0 %464
    %v466 = vsel %vm459, %v406, -inf
    %467 = vmax.xlane.f32.xlu0 %v466
    %v468 = vpop.xlane.xlu0 %467
    %v469 = vsel %vm459, %v454, -inf
    %470 = vmax.xlane.f32.xlu0 %v469
    %v471 = vpop.xlane.xlu0 %470
    %v472 = vsub.f32 %v310, %v462
    %v473 = vsub.f32 %v358, %v465
    %v474 = vsub.f32 %v406, %v468
    %v475 = vsub.f32 %v454, %v471
    %v476 = vmul.f32 %v472, 1.442695
    %v477 = vpow.pop %v476
    %v478 = vmul.f32 %v473, 1.442695
    %v479 = vpow.pop %v478
    %v480 = vmul.f32 %v474, 1.442695
    %v481 = vpow.pop %v480
    %v482 = vmul.f32 %v475, 1.442695
    %v483 = vpow.pop %v482
    %v484 = vsel %vm459, %v477, 0.0
    %485 = vadd.xlane.f32.xlu0 %v484
    %v486 = vpop.xlane.xlu0 %485
    %v487 = vsel %vm459, %v479, 0.0
    %488 = vadd.xlane.f32.xlu0 %v487
    %v489 = vpop.xlane.xlu0 %488
    %v490 = vsel %vm459, %v481, 0.0
    %491 = vadd.xlane.f32.xlu0 %v490
    %v492 = vpop.xlane.xlu0 %491
    %v493 = vsel %vm459, %v483, 0.0
    %494 = vadd.xlane.f32.xlu0 %v493
    %v495 = vpop.xlane.xlu0 %494
    %v496 = vrcp.pop %v486
    %v497 = vrcp.pop %v489
    %v498 = vrcp.pop %v492
    %v499 = vrcp.pop %v495
    %v500 = vmul.f32 %v477, %v496
    %v501 = vmul.f32 %v479, %v497
    %v502 = vmul.f32 %v481, %v498
    %v503 = vmul.f32 %v483, %v499
    %v504 = vpack.c.bf16 %v500, %v500
    %v505 = vpack.c.bf16 %v501, %v501
    %v506 = vpack.c.bf16 %v502, %v502
    %v507 = vpack.c.bf16 %v503, %v503
    %v509 = vsel %vm459, %v504, 0
    %vm511 = vcmask 1043456
    %v513 = vsel %vm511, %v234, 0
    %515 = vmatprep.subr.bf16.mxu0 0
    %516 = vmatpush1.bf16.msra.mxu0 %v513
    %517 = vmatprep.subr.bf16.mxu0 0
    %518 = vmatpush1.bf16.msra.mxu0 0
    %519 = vmatprep.subr.bf16.mxu0 0
    %520 = vmatpush1.bf16.msra.mxu0 0
    %521 = vmatprep.subr.bf16.mxu0 0
    %522 = vmatpush1.bf16.msra.mxu0 0
    %523 = vmatprep.subr.bf16.mxu0 0
    %524 = vmatpush1.bf16.msra.mxu0 0
    %525 = vmatprep.subr.bf16.mxu0 0
    %526 = vmatpush1.bf16.msra.mxu0 0
    %527 = vmatprep.subr.bf16.mxu0 0
    %528 = vmatpush1.bf16.msra.mxu0 0
    %529 = vmatprep.subr.bf16.mxu0 0
    %530 = vmatpush1.bf16.msra.mxu0 0
    %531 = vmatprep.subr.bf16.mxu0 0
    %532 = vmatpush1.bf16.msra.mxu0 0
    %533 = vmatprep.subr.bf16.mxu0 0
    %534 = vmatpush1.bf16.msra.mxu0 0
    %535 = vmatprep.subr.bf16.mxu0 0
    %536 = vmatpush1.bf16.msra.mxu0 0
    %537 = vmatprep.subr.bf16.mxu0 0
    %538 = vmatpush1.bf16.msra.mxu0 0
    %539 = vmatprep.subr.bf16.mxu0 0
    %540 = vmatpush1.bf16.msra.mxu0 0
    %541 = vmatprep.subr.bf16.mxu0 0
    %542 = vmatpush1.bf16.msra.mxu0 0
    %543 = vmatprep.subr.bf16.mxu0 0
    %544 = vmatpush1.bf16.msra.mxu0 0
    %545 = vmatprep.subr.bf16.mxu0 0
    %546 = vmatpush1.bf16.msra.mxu0 0
    %547 = vmatprep.mubr.bf16.mxu0 0
    %548 = vmatmul.mubr.bf16.gmra.mrb[0].mxu0 %v509
    %v549 = vpop.f32.mrb[0].mxu0
    %v550 = vadd.f32 0.0, %v549
    %v551 = vpop.f32.mrb[0].mxu0
    %v552 = vpop.f32.mrb[0].mxu0
    %v553 = vpop.f32.mrb[0].mxu0
    %554 = vdwg.mxu0
    %v556 = vsel %vm459, %v505, 0
    %v559 = vsel %vm511, %v235, 0
    %561 = vmatprep.subr.bf16.mxu0 0
    %562 = vmatpush1.bf16.msra.mxu0 %v559
    %563 = vmatprep.subr.bf16.mxu0 0
    %564 = vmatpush1.bf16.msra.mxu0 0
    %565 = vmatprep.subr.bf16.mxu0 0
    %566 = vmatpush1.bf16.msra.mxu0 0
    %567 = vmatprep.subr.bf16.mxu0 0
    %568 = vmatpush1.bf16.msra.mxu0 0
    %569 = vmatprep.subr.bf16.mxu0 0
    %570 = vmatpush1.bf16.msra.mxu0 0
    %571 = vmatprep.subr.bf16.mxu0 0
    %572 = vmatpush1.bf16.msra.mxu0 0
    %573 = vmatprep.subr.bf16.mxu0 0
    %574 = vmatpush1.bf16.msra.mxu0 0
    %575 = vmatprep.subr.bf16.mxu0 0
    %576 = vmatpush1.bf16.msra.mxu0 0
    %577 = vmatprep.subr.bf16.mxu0 0
    %578 = vmatpush1.bf16.msra.mxu0 0
    %579 = vmatprep.subr.bf16.mxu0 0
    %580 = vmatpush1.bf16.msra.mxu0 0
    %581 = vmatprep.subr.bf16.mxu0 0
    %582 = vmatpush1.bf16.msra.mxu0 0
    %583 = vmatprep.subr.bf16.mxu0 0
    %584 = vmatpush1.bf16.msra.mxu0 0
    %585 = vmatprep.subr.bf16.mxu0 0
    %586 = vmatpush1.bf16.msra.mxu0 0
    %587 = vmatprep.subr.bf16.mxu0 0
    %588 = vmatpush1.bf16.msra.mxu0 0
    %589 = vmatprep.subr.bf16.mxu0 0
    %590 = vmatpush1.bf16.msra.mxu0 0
    %591 = vmatprep.subr.bf16.mxu0 0
    %592 = vmatpush1.bf16.msra.mxu0 0
    %593 = vmatprep.mubr.bf16.mxu0 0
    %594 = vmatmul.mubr.bf16.gmra.mrb[0].mxu0 %v556
    %v595 = vpop.f32.mrb[0].mxu0
    %v596 = vadd.f32 0.0, %v595
    %v597 = vpop.f32.mrb[0].mxu0
    %v598 = vpop.f32.mrb[0].mxu0
    %v599 = vpop.f32.mrb[0].mxu0
    %600 = vdwg.mxu0
    %v602 = vsel %vm459, %v506, 0
    %v605 = vsel %vm511, %v239, 0
    %607 = vmatprep.subr.bf16.mxu0 0
    %608 = vmatpush1.bf16.msra.mxu0 %v605
    %609 = vmatprep.subr.bf16.mxu0 0
    %610 = vmatpush1.bf16.msra.mxu0 0
    %611 = vmatprep.subr.bf16.mxu0 0
    %612 = vmatpush1.bf16.msra.mxu0 0
    %613 = vmatprep.subr.bf16.mxu0 0
    %614 = vmatpush1.bf16.msra.mxu0 0
    %615 = vmatprep.subr.bf16.mxu0 0
    %616 = vmatpush1.bf16.msra.mxu0 0
    %617 = vmatprep.subr.bf16.mxu0 0
    %618 = vmatpush1.bf16.msra.mxu0 0
    %619 = vmatprep.subr.bf16.mxu0 0
    %620 = vmatpush1.bf16.msra.mxu0 0
    %621 = vmatprep.subr.bf16.mxu0 0
    %622 = vmatpush1.bf16.msra.mxu0 0
    %623 = vmatprep.subr.bf16.mxu0 0
    %624 = vmatpush1.bf16.msra.mxu0 0
    %625 = vmatprep.subr.bf16.mxu0 0
    %626 = vmatpush1.bf16.msra.mxu0 0
    %627 = vmatprep.subr.bf16.mxu0 0
    %628 = vmatpush1.bf16.msra.mxu0 0
    %629 = vmatprep.subr.bf16.mxu0 0
    %630 = vmatpush1.bf16.msra.mxu0 0
    %631 = vmatprep.subr.bf16.mxu0 0
    %632 = vmatpush1.bf16.msra.mxu0 0
    %633 = vmatprep.subr.bf16.mxu0 0
    %634 = vmatpush1.bf16.msra.mxu0 0
    %635 = vmatprep.subr.bf16.mxu0 0
    %636 = vmatpush1.bf16.msra.mxu0 0
    %637 = vmatprep.subr.bf16.mxu0 0
    %638 = vmatpush1.bf16.msra.mxu0 0
    %639 = vmatprep.mubr.bf16.mxu0 0
    %640 = vmatmul.mubr.bf16.gmra.mrb[0].mxu0 %v602
    %v641 = vpop.f32.mrb[0].mxu0
    %v642 = vadd.f32 0.0, %v641
    %v643 = vpop.f32.mrb[0].mxu0
    %v644 = vpop.f32.mrb[0].mxu0
    %v645 = vpop.f32.mrb[0].mxu0
    %646 = vdwg.mxu0
    %v648 = vsel %vm459, %v507, 0
    %v651 = vsel %vm511, %v241, 0
    %653 = vmatprep.subr.bf16.mxu0 0
    %654 = vmatpush1.bf16.msra.mxu0 %v651
    %655 = vmatprep.subr.bf16.mxu0 0
    %656 = vmatpush1.bf16.msra.mxu0 0
    %657 = vmatprep.subr.bf16.mxu0 0
    %658 = vmatpush1.bf16.msra.mxu0 0
    %659 = vmatprep.subr.bf16.mxu0 0
    %660 = vmatpush1.bf16.msra.mxu0 0
    %661 = vmatprep.subr.bf16.mxu0 0
    %662 = vmatpush1.bf16.msra.mxu0 0
    %663 = vmatprep.subr.bf16.mxu0 0
    %664 = vmatpush1.bf16.msra.mxu0 0
    %665 = vmatprep.subr.bf16.mxu0 0
    %666 = vmatpush1.bf16.msra.mxu0 0
    %667 = vmatprep.subr.bf16.mxu0 0
    %668 = vmatpush1.bf16.msra.mxu0 0
    %669 = vmatprep.subr.bf16.mxu0 0
    %670 = vmatpush1.bf16.msra.mxu0 0
    %671 = vmatprep.subr.bf16.mxu0 0
    %672 = vmatpush1.bf16.msra.mxu0 0
    %673 = vmatprep.subr.bf16.mxu0 0
    %674 = vmatpush1.bf16.msra.mxu0 0
    %675 = vmatprep.subr.bf16.mxu0 0
    %676 = vmatpush1.bf16.msra.mxu0 0
    %677 = vmatprep.subr.bf16.mxu0 0
    %678 = vmatpush1.bf16.msra.mxu0 0
    %679 = vmatprep.subr.bf16.mxu0 0
    %680 = vmatpush1.bf16.msra.mxu0 0
    %681 = vmatprep.subr.bf16.mxu0 0
    %682 = vmatpush1.bf16.msra.mxu0 0
    %683 = vmatprep.subr.bf16.mxu0 0
    %684 = vmatpush1.bf16.msra.mxu0 0
    %685 = vmatprep.mubr.bf16.mxu0 0
    %686 = vmatmul.mubr.bf16.gmra.mrb[0].mxu0 %v648
    %v687 = vpop.f32.mrb[0].mxu0
    %v688 = vadd.f32 0.0, %v687
    %v689 = vpop.f32.mrb[0].mxu0
    %v690 = vpop.f32.mrb[0].mxu0
    %v691 = vpop.f32.mrb[0].mxu0
    %692 = vdwg.mxu0
    %v693 = vld [vmem:[%s6] sm:$0xf]
    %v694 = vld [vmem:[%s6 + $0x4] sm:$0xf]
    %v695 = vld [vmem:[%s6 + $0x8] sm:$0xf]
    %v696 = vld [vmem:[%s6 + $0xc] sm:$0xf]
    %v697 = vld [vmem:[%s6 + $0x10] sm:$0xf]
    %v698 = vld [vmem:[%s6 + $0x14] sm:$0xf]
    %v699 = vld [vmem:[%s6 + $0x18] sm:$0xf]
    %v700 = vld [vmem:[%s6 + $0x1c] sm:$0xf]
    %v701 = vld [vmem:[%s7] sm:$0x1]
    %v702 = vpack.c.bf16 %v596, %v550
    %v707 = vunpack.c.l.b16 %v693
    %v708 = vunpack.c.l.b16 %v694
    %v709 = vunpack.c.l.b16 %v695
    %v710 = vunpack.c.l.b16 %v696
    %v711 = vpack.c.b16 %v708, %v707
    %v712 = vpack.c.b16 %v710, %v709
    %v716 = vsel %vm268, %v702, 0
    %718 = vmatprep.subr.bf16.mxu0 0
    %719 = vmatpush1.bf16.msra.mxu0 %v711
    %720 = vmatprep.subr.bf16.mxu0 0
    %721 = vmatpush1.bf16.msra.mxu0 %v712
    %722 = vmatprep.subr.bf16.mxu0 0
    %723 = vmatpush1.bf16.msra.mxu0 0
    %724 = vmatprep.subr.bf16.mxu0 0
    %725 = vmatpush1.bf16.msra.mxu0 0
    %726 = vmatprep.subr.bf16.mxu0 0
    %727 = vmatpush1.bf16.msra.mxu0 0
    %728 = vmatprep.subr.bf16.mxu0 0
    %729 = vmatpush1.bf16.msra.mxu0 0
    %730 = vmatprep.subr.bf16.mxu0 0
    %731 = vmatpush1.bf16.msra.mxu0 0
    %732 = vmatprep.subr.bf16.mxu0 0
    %733 = vmatpush1.bf16.msra.mxu0 0
    %734 = vmatprep.subr.bf16.mxu0 0
    %735 = vmatpush1.bf16.msra.mxu0 0
    %736 = vmatprep.subr.bf16.mxu0 0
    %737 = vmatpush1.bf16.msra.mxu0 0
    %738 = vmatprep.subr.bf16.mxu0 0
    %739 = vmatpush1.bf16.msra.mxu0 0
    %740 = vmatprep.subr.bf16.mxu0 0
    %741 = vmatpush1.bf16.msra.mxu0 0
    %742 = vmatprep.subr.bf16.mxu0 0
    %743 = vmatpush1.bf16.msra.mxu0 0
    %744 = vmatprep.subr.bf16.mxu0 0
    %745 = vmatpush1.bf16.msra.mxu0 0
    %746 = vmatprep.subr.bf16.mxu0 0
    %747 = vmatpush1.bf16.msra.mxu0 0
    %748 = vmatprep.subr.bf16.mxu0 0
    %749 = vmatpush1.bf16.msra.mxu0 0
    %750 = vmatprep.mubr.bf16.mxu0 0
    %751 = vmatmul.mubr.bf16.gmra.mrb[0].mxu0 %v716
    %v752 = vpop.f32.mrb[0].mxu0
    %v753 = vadd.f32 0.0, %v752
    %v754 = vpop.f32.mrb[0].mxu0
    %v755 = vpop.f32.mrb[0].mxu0
    %v756 = vadd.f32 0.0, %v755
    %v757 = vpop.f32.mrb[0].mxu0
    %758 = vdwg.mxu0
    %v760 = vlaneseq
    %v761 = vshrl.u32 %v760, 7
    %v762 = vsub.s32 0, %v761
    %v763 = vrot.slane %v701, %v762
    %v765 = vadd.f32 %v763, %v753
    %v766 = vadd.f32 %v763, %v756
    %v767 = vpack.c.bf16 %v688, %v642
    %v772 = vunpack.c.l.b16 %v697
    %v773 = vunpack.c.l.b16 %v698
    %v774 = vunpack.c.l.b16 %v699
    %v775 = vunpack.c.l.b16 %v700
    %v776 = vpack.c.b16 %v773, %v772
    %v777 = vpack.c.b16 %v775, %v774
    %v781 = vsel %vm268, %v767, 0
    %783 = vmatprep.subr.bf16.mxu0 0
    %784 = vmatpush1.bf16.msra.mxu0 %v776
    %785 = vmatprep.subr.bf16.mxu0 0
    %786 = vmatpush1.bf16.msra.mxu0 %v777
    %787 = vmatprep.subr.bf16.mxu0 0
    %788 = vmatpush1.bf16.msra.mxu0 0
    %789 = vmatprep.subr.bf16.mxu0 0
    %790 = vmatpush1.bf16.msra.mxu0 0
    %791 = vmatprep.subr.bf16.mxu0 0
    %792 = vmatpush1.bf16.msra.mxu0 0
    %793 = vmatprep.subr.bf16.mxu0 0
    %794 = vmatpush1.bf16.msra.mxu0 0
    %795 = vmatprep.subr.bf16.mxu0 0
    %796 = vmatpush1.bf16.msra.mxu0 0
    %797 = vmatprep.subr.bf16.mxu0 0
    %798 = vmatpush1.bf16.msra.mxu0 0
    %799 = vmatprep.subr.bf16.mxu0 0
    %800 = vmatpush1.bf16.msra.mxu0 0
    %801 = vmatprep.subr.bf16.mxu0 0
    %802 = vmatpush1.bf16.msra.mxu0 0
    %803 = vmatprep.subr.bf16.mxu0 0
    %804 = vmatpush1.bf16.msra.mxu0 0
    %805 = vmatprep.subr.bf16.mxu0 0
    %806 = vmatpush1.bf16.msra.mxu0 0
    %807 = vmatprep.subr.bf16.mxu0 0
    %808 = vmatpush1.bf16.msra.mxu0 0
    %809 = vmatprep.subr.bf16.mxu0 0
    %810 = vmatpush1.bf16.msra.mxu0 0
    %811 = vmatprep.subr.bf16.mxu0 0
    %812 = vmatpush1.bf16.msra.mxu0 0
    %813 = vmatprep.subr.bf16.mxu0 0
    %814 = vmatpush1.bf16.msra.mxu0 0
    %815 = vmatprep.mubr.bf16.mxu0 0
    %816 = vmatmul.mubr.bf16.gmra.mrb[0].mxu0 %v781
    %v817 = vpop.f32.mrb[0].mxu0
    %v818 = vadd.f32 0.0, %v817
    %v819 = vpop.f32.mrb[0].mxu0
    %v820 = vpop.f32.mrb[0].mxu0
    %v821 = vadd.f32 0.0, %v820
    %v822 = vpop.f32.mrb[0].mxu0
    %823 = vdwg.mxu0
    %v824 = vadd.f32 %v765, %v818
    %v825 = vadd.f32 %v766, %v821
    %v826 = vadd.f32 %v117, %v824
    %v827 = vadd.f32 %v118, %v825
    %v828 = vld [vmem:[%s8] sm:$0x1]
    %v829 = vld [vmem:[%s9] sm:$0x1]
    %v830 = vsel %vm75, %v826, 0.0
    %831 = vadd.xlane.f32.xlu0 %v830
    %v832 = vpop.xlane.xlu0 %831
    %v833 = vsel %vm75, %v827, 0.0
    %834 = vadd.xlane.f32.xlu0 %v833
    %v835 = vpop.xlane.xlu0 %834
    %v836 = vmul.f32 %v832, %v82
    %v837 = vmul.f32 %v835, %v82
    %v838 = vsub.f32 %v826, %v836
    %v839 = vsub.f32 %v827, %v837
    %v840 = vmul.f32 %v838, %v838
    %v841 = vmul.f32 %v839, %v839
    %v842 = vsel %vm75, %v840, 0.0
    %843 = vadd.xlane.f32.xlu0 %v842
    %v844 = vpop.xlane.xlu0 %843
    %v845 = vsel %vm75, %v841, 0.0
    %846 = vadd.xlane.f32.xlu0 %v845
    %v847 = vpop.xlane.xlu0 %846
    %v848 = vmul.f32 %v844, %v82
    %v849 = vmul.f32 %v847, %v82
    %v850 = vadd.f32 %v848, 1e-05
    %v851 = vadd.f32 %v849, 1e-05
    %v852 = vrsqrt.pop %v850
    %v853 = vrsqrt.pop %v851
    %v854 = vmul.f32 %v838, %v852
    %v855 = vmul.f32 %v839, %v853
    %v857 = vlaneseq
    %v858 = vshrl.u32 %v857, 7
    %v859 = vsub.s32 0, %v858
    %v860 = vrot.slane %v828, %v859
    %v862 = vmul.f32 %v854, %v860
    %v863 = vmul.f32 %v855, %v860
    %v865 = vlaneseq
    %v866 = vshrl.u32 %v865, 7
    %v867 = vsub.s32 0, %v866
    %v868 = vrot.slane %v829, %v867
    %v870 = vadd.f32 %v862, %v868
    %v871 = vadd.f32 %v863, %v868
    %v872 = vpack.c.bf16 %v871, %v870
    %v873 = vld [vmem:[%s10] sm:$0xf]
    %v874 = vld [vmem:[%s10 + $0x4] sm:$0xf]
    %v875 = vld [vmem:[%s10 + $0x8] sm:$0xf]
    %v876 = vld [vmem:[%s10 + $0xc] sm:$0xf]
    %v877 = vld [vmem:[%s10 + $0x10] sm:$0xf]
    %v878 = vld [vmem:[%s10 + $0x14] sm:$0xf]
    %v879 = vld [vmem:[%s10 + $0x18] sm:$0xf]
    %v880 = vld [vmem:[%s10 + $0x1c] sm:$0xf]
    %v881 = vld [vmem:[%s11] sm:$0x1]
    %v883 = vlaneseq
    %v884 = vshrl.u32 %v883, 7
    %v885 = vsub.s32 0, %v884
    %v886 = vrot.slane %v881, %v885
    %v896 = vunpack.c.l.b16 %v873
    %v897 = vunpack.c.l.b16 %v874
    %v898 = vunpack.c.l.b16 %v875
    %v899 = vunpack.c.l.b16 %v876
    %v900 = vunpack.c.l.b16 %v877
    %v901 = vunpack.c.l.b16 %v878
    %v902 = vunpack.c.l.b16 %v879
    %v903 = vunpack.c.l.b16 %v880
    %v904 = vpack.c.b16 %v897, %v896
    %v905 = vpack.c.b16 %v899, %v898
    %v906 = vpack.c.b16 %v901, %v900
    %v907 = vpack.c.b16 %v903, %v902
    %v913 = vsel %vm75, %v872, 0
    %915 = vmatprep.subr.bf16.mxu0 0
    %916 = vmatpush1.bf16.msra.mxu0 %v904
    %917 = vmatprep.subr.bf16.mxu0 0
    %918 = vmatpush1.bf16.msra.mxu0 %v905
    %919 = vmatprep.subr.bf16.mxu0 0
    %920 = vmatpush1.bf16.msra.mxu0 %v906
    %921 = vmatprep.subr.bf16.mxu0 0
    %922 = vmatpush1.bf16.msra.mxu0 %v907
    %923 = vmatprep.subr.bf16.mxu0 0
    %924 = vmatpush1.bf16.msra.mxu0 0
    %925 = vmatprep.subr.bf16.mxu0 0
    %926 = vmatpush1.bf16.msra.mxu0 0
    %927 = vmatprep.subr.bf16.mxu0 0
    %928 = vmatpush1.bf16.msra.mxu0 0
    %929 = vmatprep.subr.bf16.mxu0 0
    %930 = vmatpush1.bf16.msra.mxu0 0
    %931 = vmatprep.subr.bf16.mxu0 0
    %932 = vmatpush1.bf16.msra.mxu0 0
    %933 = vmatprep.subr.bf16.mxu0 0
    %934 = vmatpush1.bf16.msra.mxu0 0
    %935 = vmatprep.subr.bf16.mxu0 0
    %936 = vmatpush1.bf16.msra.mxu0 0
    %937 = vmatprep.subr.bf16.mxu0 0
    %938 = vmatpush1.bf16.msra.mxu0 0
    %939 = vmatprep.subr.bf16.mxu0 0
    %940 = vmatpush1.bf16.msra.mxu0 0
    %941 = vmatprep.subr.bf16.mxu0 0
    %942 = vmatpush1.bf16.msra.mxu0 0
    %943 = vmatprep.subr.bf16.mxu0 0
    %944 = vmatpush1.bf16.msra.mxu0 0
    %945 = vmatprep.subr.bf16.mxu0 0
    %946 = vmatpush1.bf16.msra.mxu0 0
    %947 = vmatprep.mubr.bf16.mxu0 0
    %948 = vmatmul.mubr.bf16.gmra.mrb[0].mxu0 %v913
    %v949 = vpop.f32.mrb[0].mxu0
    %v950 = vadd.f32 %v886, %v949
    %v951 = vpop.f32.mrb[0].mxu0
    %v952 = vpop.f32.mrb[0].mxu0
    %v953 = vadd.f32 %v886, %v952
    %v954 = vpop.f32.mrb[0].mxu0
    %955 = vdwg.mxu0
    %v956 = vmul.f32 %v950, 0.5
    %v957 = vmul.f32 %v953, 0.5
    %v958 = vmul.f32 %v950, 0.70710677
    %v959 = vmul.f32 %v953, 0.70710677
    %v960 = verf.f32.pop %v958
    %v961 = verf.f32.pop %v959
    %v962 = vadd.f32 %v960, 1.0
    %v963 = vadd.f32 %v961, 1.0
    %v964 = vmul.f32 %v956, %v962
    %v965 = vmul.f32 %v957, %v963
    %v966 = vpack.c.bf16 %v965, %v964
    %v967 = vld [vmem:[%s12] sm:$0xf]
    %v968 = vld [vmem:[%s12 + $0x4] sm:$0xf]
    %v969 = vld [vmem:[%s12 + $0x8] sm:$0xf]
    %v970 = vld [vmem:[%s12 + $0xc] sm:$0xf]
    %v971 = vld [vmem:[%s12 + $0x10] sm:$0xf]
    %v972 = vld [vmem:[%s12 + $0x14] sm:$0xf]
    %v973 = vld [vmem:[%s12 + $0x18] sm:$0xf]
    %v974 = vld [vmem:[%s12 + $0x1c] sm:$0xf]
    %v975 = vld [vmem:[%s12 + $0x20] sm:$0xf]
    %v976 = vld [vmem:[%s12 + $0x24] sm:$0xf]
    %v977 = vld [vmem:[%s12 + $0x28] sm:$0xf]
    %v978 = vld [vmem:[%s12 + $0x2c] sm:$0xf]
    %v979 = vld [vmem:[%s12 + $0x30] sm:$0xf]
    %v980 = vld [vmem:[%s12 + $0x34] sm:$0xf]
    %v981 = vld [vmem:[%s12 + $0x38] sm:$0xf]
    %v982 = vld [vmem:[%s12 + $0x3c] sm:$0xf]
    %v983 = vld [vmem:[%s13] sm:$0x1]
    %v985 = vlaneseq
    %v986 = vshrl.u32 %v985, 7
    %v987 = vsub.s32 0, %v986
    %v988 = vrot.slane %v983, %v987
    %v1006 = vunpack.c.l.b16 %v967
    %v1007 = vunpack.c.l.b16 %v968
    %v1008 = vunpack.c.l.b16 %v969
    %v1009 = vunpack.c.l.b16 %v970
    %v1010 = vunpack.c.l.b16 %v971
    %v1011 = vunpack.c.l.b16 %v972
    %v1012 = vunpack.c.l.b16 %v973
    %v1013 = vunpack.c.l.b16 %v974
    %v1014 = vunpack.c.l.b16 %v975
    %v1015 = vunpack.c.l.b16 %v976
    %v1016 = vunpack.c.l.b16 %v977
    %v1017 = vunpack.c.l.b16 %v978
    %v1018 = vunpack.c.l.b16 %v979
    %v1019 = vunpack.c.l.b16 %v980
    %v1020 = vunpack.c.l.b16 %v981
    %v1021 = vunpack.c.l.b16 %v982
    %v1022 = vpack.c.b16 %v1007, %v1006
    %v1023 = vpack.c.b16 %v1009, %v1008
    %v1024 = vpack.c.b16 %v1011, %v1010
    %v1025 = vpack.c.b16 %v1013, %v1012
    %v1026 = vpack.c.b16 %v1015, %v1014
    %v1027 = vpack.c.b16 %v1017, %v1016
    %v1028 = vpack.c.b16 %v1019, %v1018
    %v1029 = vpack.c.b16 %v1021, %v1020
    %1038 = vmatprep.subr.bf16.mxu0 0
    %1039 = vmatpush1.bf16.msra.mxu0 %v1022
    %1040 = vmatprep.subr.bf16.mxu0 0
    %1041 = vmatpush1.bf16.msra.mxu0 %v1023
    %1042 = vmatprep.subr.bf16.mxu0 0
    %1043 = vmatpush1.bf16.msra.mxu0 %v1024
    %1044 = vmatprep.subr.bf16.mxu0 0
    %1045 = vmatpush1.bf16.msra.mxu0 %v1025
    %1046 = vmatprep.subr.bf16.mxu0 0
    %1047 = vmatpush1.bf16.msra.mxu0 %v1026
    %1048 = vmatprep.subr.bf16.mxu0 0
    %1049 = vmatpush1.bf16.msra.mxu0 %v1027
    %1050 = vmatprep.subr.bf16.mxu0 0
    %1051 = vmatpush1.bf16.msra.mxu0 %v1028
    %1052 = vmatprep.subr.bf16.mxu0 0
    %1053 = vmatpush1.bf16.msra.mxu0 %v1029
    %1054 = vmatprep.subr.bf16.mxu0 0
    %1055 = vmatpush1.bf16.msra.mxu0 0
    %1056 = vmatprep.subr.bf16.mxu0 0
    %1057 = vmatpush1.bf16.msra.mxu0 0
    %1058 = vmatprep.subr.bf16.mxu0 0
    %1059 = vmatpush1.bf16.msra.mxu0 0
    %1060 = vmatprep.subr.bf16.mxu0 0
    %1061 = vmatpush1.bf16.msra.mxu0 0
    %1062 = vmatprep.subr.bf16.mxu0 0
    %1063 = vmatpush1.bf16.msra.mxu0 0
    %1064 = vmatprep.subr.bf16.mxu0 0
    %1065 = vmatpush1.bf16.msra.mxu0 0
    %1066 = vmatprep.subr.bf16.mxu0 0
    %1067 = vmatpush1.bf16.msra.mxu0 0
    %1068 = vmatprep.subr.bf16.mxu0 0
    %1069 = vmatpush1.bf16.msra.mxu0 0
    %1070 = vmatprep.mubr.bf16.mxu0 0
    %1071 = vmatmul.mubr.bf16.gmra.mrb[0].mxu0 %v966
    %v1072 = vpop.f32.mrb[0].mxu0
    %v1073 = vadd.f32 %v988, %v1072
    %v1074 = vpop.f32.mrb[0].mxu0
    %v1075 = vpop.f32.mrb[0].mxu0
    %v1076 = vadd.f32 %v988, %v1075
    %v1077 = vpop.f32.mrb[0].mxu0
    %1078 = vdwg.mxu0
    %v1079 = vadd.f32 %v870, %v1073
    %v1080 = vadd.f32 %v871, %v1076
    %v1081 = vld [vmem:[%s14] sm:$0x1]
    %v1082 = vld [vmem:[%s15] sm:$0x1]
    %v1083 = vsel %vm75, %v1079, 0.0
    %1084 = vadd.xlane.f32.xlu0 %v1083
    %v1085 = vpop.xlane.xlu0 %1084
    %v1086 = vsel %vm75, %v1080, 0.0
    %1087 = vadd.xlane.f32.xlu0 %v1086
    %v1088 = vpop.xlane.xlu0 %1087
    %v1089 = vmul.f32 %v1085, %v82
    %v1090 = vmul.f32 %v1088, %v82
    %v1091 = vsub.f32 %v1079, %v1089
    %v1092 = vsub.f32 %v1080, %v1090
    %v1093 = vmul.f32 %v1091, %v1091
    %v1094 = vmul.f32 %v1092, %v1092
    %v1095 = vsel %vm75, %v1093, 0.0
    %1096 = vadd.xlane.f32.xlu0 %v1095
    %v1097 = vpop.xlane.xlu0 %1096
    %v1098 = vsel %vm75, %v1094, 0.0
    %1099 = vadd.xlane.f32.xlu0 %v1098
    %v1100 = vpop.xlane.xlu0 %1099
    %v1101 = vmul.f32 %v1097, %v82
    %v1102 = vmul.f32 %v1100, %v82
    %v1103 = vadd.f32 %v1101, 1e-05
    %v1104 = vadd.f32 %v1102, 1e-05
    %v1105 = vrsqrt.pop %v1103
    %v1106 = vrsqrt.pop %v1104
    %v1107 = vmul.f32 %v1091, %v1105
    %v1108 = vmul.f32 %v1092, %v1106
    %v1110 = vlaneseq
    %v1111 = vshrl.u32 %v1110, 7
    %v1112 = vsub.s32 0, %v1111
    %v1113 = vrot.slane %v1081, %v1112
    %v1115 = vmul.f32 %v1107, %v1113
    %v1116 = vmul.f32 %v1108, %v1113
    %v1118 = vlaneseq
    %v1119 = vshrl.u32 %v1118, 7
    %v1120 = vsub.s32 0, %v1119
    %v1121 = vrot.slane %v1082, %v1120
    %v1123 = vadd.f32 %v1115, %v1121
    %v1124 = vadd.f32 %v1116, %v1121
    %v1125 = vpack.c.bf16 %v1124, %v1123
    %s1126 = scalar_lea.vmem %s4, 64
    %v1127 = vld [vmem:[%s1126] sm:$0xff]
    %v1128 = vld [vmem:[%s1126 + $0x8] sm:$0xff]
    %v1129 = vld [vmem:[%s1126 + $0x10] sm:$0xff]
    %v1130 = vld [vmem:[%s1126 + $0x18] sm:$0xff]
    %v1131 = vld [vmem:[%s1126 + $0x20] sm:$0xff]
    %v1132 = vld [vmem:[%s1126 + $0x28] sm:$0xff]
    %v1133 = vld [vmem:[%s1126 + $0x30] sm:$0xff]
    %v1134 = vld [vmem:[%s1126 + $0x38] sm:$0xff]
    %s1135 = scalar_lea.vmem %s5, 2
    %v1136 = vld [vmem:[%s1135] sm:$0x3]
    %v1138 = vlaneseq
    %v1139 = vshrl.u32 %v1138, 7
    %v1140 = vsub.s32 0, %v1139
    %v1141 = vrot.slane %v1136, %v1140
    %v1142 = vlaneseq
    %v1143 = vshrl.u32 %v1142, 7
    %v1144 = vsub.s32 1, %v1143
    %v1145 = vrot.slane %v1136, %v1144
    %v1156 = vunpack.c.l.b16 %v1127
    %v1157 = vunpack.c.h.b16 %v1127
    %v1158 = vunpack.c.l.b16 %v1128
    %v1159 = vunpack.c.h.b16 %v1128
    %v1160 = vunpack.c.l.b16 %v1129
    %v1161 = vunpack.c.h.b16 %v1129
    %v1162 = vunpack.c.l.b16 %v1130
    %v1163 = vunpack.c.h.b16 %v1130
    %v1164 = vunpack.c.l.b16 %v1131
    %v1165 = vunpack.c.h.b16 %v1131
    %v1166 = vunpack.c.l.b16 %v1132
    %v1167 = vunpack.c.h.b16 %v1132
    %v1168 = vunpack.c.l.b16 %v1133
    %v1169 = vunpack.c.h.b16 %v1133
    %v1170 = vunpack.c.l.b16 %v1134
    %v1171 = vunpack.c.h.b16 %v1134
    %v1172 = vpack.c.b16 %v1158, %v1156
    %v1173 = vpack.c.b16 %v1159, %v1157
    %v1174 = vpack.c.b16 %v1162, %v1160
    %v1175 = vpack.c.b16 %v1163, %v1161
    %v1176 = vpack.c.b16 %v1166, %v1164
    %v1177 = vpack.c.b16 %v1167, %v1165
    %v1178 = vpack.c.b16 %v1170, %v1168
    %v1179 = vpack.c.b16 %v1171, %v1169
    %v1189 = vsel %vm75, %v1125, 0
    %1191 = vmatprep.subr.bf16.mxu0 %v1173
    %1192 = vmatpush1.bf16.msra.mxu0 %v1172
    %1193 = vmatprep.subr.bf16.mxu0 %v1175
    %1194 = vmatpush1.bf16.msra.mxu0 %v1174
    %1195 = vmatprep.subr.bf16.mxu0 %v1177
    %1196 = vmatpush1.bf16.msra.mxu0 %v1176
    %1197 = vmatprep.subr.bf16.mxu0 %v1179
    %1198 = vmatpush1.bf16.msra.mxu0 %v1178
    %1199 = vmatprep.subr.bf16.mxu0 0
    %1200 = vmatpush1.bf16.msra.mxu0 0
    %1201 = vmatprep.subr.bf16.mxu0 0
    %1202 = vmatpush1.bf16.msra.mxu0 0
    %1203 = vmatprep.subr.bf16.mxu0 0
    %1204 = vmatpush1.bf16.msra.mxu0 0
    %1205 = vmatprep.subr.bf16.mxu0 0
    %1206 = vmatpush1.bf16.msra.mxu0 0
    %1207 = vmatprep.subr.bf16.mxu0 0
    %1208 = vmatpush1.bf16.msra.mxu0 0
    %1209 = vmatprep.subr.bf16.mxu0 0
    %1210 = vmatpush1.bf16.msra.mxu0 0
    %1211 = vmatprep.subr.bf16.mxu0 0
    %1212 = vmatpush1.bf16.msra.mxu0 0
    %1213 = vmatprep.subr.bf16.mxu0 0
    %1214 = vmatpush1.bf16.msra.mxu0 0
    %1215 = vmatprep.subr.bf16.mxu0 0
    %1216 = vmatpush1.bf16.msra.mxu0 0
    %1217 = vmatprep.subr.bf16.mxu0 0
    %1218 = vmatpush1.bf16.msra.mxu0 0
    %1219 = vmatprep.subr.bf16.mxu0 0
    %1220 = vmatpush1.bf16.msra.mxu0 0
    %1221 = vmatprep.subr.bf16.mxu0 0
    %1222 = vmatpush1.bf16.msra.mxu0 0
    %1223 = vmatprep.mubr.bf16.mxu0 0
    %1224 = vmatmul.mubr.bf16.gmra.mrb[0].mxu0 %v1189
    %v1225 = vpop.f32.mrb[0].mxu0
    %v1226 = vadd.f32 %v1141, %v1225
    %v1227 = vpop.f32.mrb[0].mxu0
    %v1228 = vadd.f32 %v1145, %v1227
    %v1229 = vpop.f32.mrb[0].mxu0
    %v1230 = vadd.f32 %v1141, %v1229
    %v1231 = vpop.f32.mrb[0].mxu0
    %v1232 = vadd.f32 %v1145, %v1231
    %1233 = vdwg.mxu0
    %v1234 = vpack.c.bf16 %v1226, %v1226
    %v1235 = vpack.c.bf16 %v1230, %v1230
    %1238 = vrot.lane.b32.xlu0 %v1234, 96
    %v1239 = vpop.permute.xlu0 %1238
    %1240 = vrot.lane.b32.xlu0 %v1235, 96
    %v1241 = vpop.permute.xlu0 %1240
    %v1242 = vpack.c.bf16 %v1228, %v1228
    %v1243 = vpack.c.bf16 %v1232, %v1232
    %1246 = vrot.lane.b32.xlu0 %v1242, 96
    %v1247 = vpop.permute.xlu0 %1246
    %1248 = vrot.lane.b32.xlu0 %v1243, 96
    %v1249 = vpop.permute.xlu0 %1248
    %1250 = vrot.lane.b32.xlu0 %v1234, 64
    %v1251 = vpop.permute.xlu0 %1250
    %v1253 = vsel %vm268, %v1234, 0
    %v1256 = vsel %vm268, %v1251, 0
    %1258 = vmatprep.subr.bf16.mxu0 0
    %1259 = vmatpush1.bf16.xpose.msra.mxu0 %v1256
    %1260 = vmatprep.subr.bf16.mxu0 0
    %1261 = vmatpush1.bf16.xpose.msra.mxu0 0
    %1262 = vmatprep.subr.bf16.mxu0 0
    %1263 = vmatpush1.bf16.xpose.msra.mxu0 0
    %1264 = vmatprep.subr.bf16.mxu0 0
    %1265 = vmatpush1.bf16.xpose.msra.mxu0 0
    %1266 = vmatprep.subr.bf16.mxu0 0
    %1267 = vmatpush1.bf16.xpose.msra.mxu0 0
    %1268 = vmatprep.subr.bf16.mxu0 0
    %1269 = vmatpush1.bf16.xpose.msra.mxu0 0
    %1270 = vmatprep.subr.bf16.mxu0 0
    %1271 = vmatpush1.bf16.xpose.msra.mxu0 0
    %1272 = vmatprep.subr.bf16.mxu0 0
    %1273 = vmatpush1.bf16.xpose.msra.mxu0 0
    %1274 = vmatprep.subr.bf16.mxu0 0
    %1275 = vmatpush1.bf16.xpose.msra.mxu0 0
    %1276 = vmatprep.subr.bf16.mxu0 0
    %1277 = vmatpush1.bf16.xpose.msra.mxu0 0
    %1278 = vmatprep.subr.bf16.mxu0 0
    %1279 = vmatpush1.bf16.xpose.msra.mxu0 0
    %1280 = vmatprep.subr.bf16.mxu0 0
    %1281 = vmatpush1.bf16.xpose.msra.mxu0 0
    %1282 = vmatprep.subr.bf16.mxu0 0
    %1283 = vmatpush1.bf16.xpose.msra.mxu0 0
    %1284 = vmatprep.subr.bf16.mxu0 0
    %1285 = vmatpush1.bf16.xpose.msra.mxu0 0
    %1286 = vmatprep.subr.bf16.mxu0 0
    %1287 = vmatpush1.bf16.xpose.msra.mxu0 0
    %1288 = vmatprep.subr.bf16.mxu0 0
    %1289 = vmatpush1.bf16.xpose.msra.mxu0 0
    %1290 = vmatprep.mubr.bf16.mxu0 0
    %1291 = vmatmul.mubr.bf16.gmra.mrb[0].mxu0 %v1253
    %v1292 = vpop.f32.mrb[0].mxu0
    %v1293 = vadd.f32 %v249, %v1292
    %v1294 = vpop.f32.mrb[0].mxu0
    %v1295 = vpop.f32.mrb[0].mxu0
    %v1296 = vpop.f32.mrb[0].mxu0
    %1297 = vdwg.mxu0
    %1298 = vrot.lane.b32.xlu0 %v1235, 64
    %v1299 = vpop.permute.xlu0 %1298
    %v1301 = vsel %vm268, %v1235, 0
    %v1304 = vsel %vm268, %v1299, 0
    %1306 = vmatprep.subr.bf16.mxu0 0
    %1307 = vmatpush1.bf16.xpose.msra.mxu0 %v1304
    %1308 = vmatprep.subr.bf16.mxu0 0
    %1309 = vmatpush1.bf16.xpose.msra.mxu0 0
    %1310 = vmatprep.subr.bf16.mxu0 0
    %1311 = vmatpush1.bf16.xpose.msra.mxu0 0
    %1312 = vmatprep.subr.bf16.mxu0 0
    %1313 = vmatpush1.bf16.xpose.msra.mxu0 0
    %1314 = vmatprep.subr.bf16.mxu0 0
    %1315 = vmatpush1.bf16.xpose.msra.mxu0 0
    %1316 = vmatprep.subr.bf16.mxu0 0
    %1317 = vmatpush1.bf16.xpose.msra.mxu0 0
    %1318 = vmatprep.subr.bf16.mxu0 0
    %1319 = vmatpush1.bf16.xpose.msra.mxu0 0
    %1320 = vmatprep.subr.bf16.mxu0 0
    %1321 = vmatpush1.bf16.xpose.msra.mxu0 0
    %1322 = vmatprep.subr.bf16.mxu0 0
    %1323 = vmatpush1.bf16.xpose.msra.mxu0 0
    %1324 = vmatprep.subr.bf16.mxu0 0
    %1325 = vmatpush1.bf16.xpose.msra.mxu0 0
    %1326 = vmatprep.subr.bf16.mxu0 0
    %1327 = vmatpush1.bf16.xpose.msra.mxu0 0
    %1328 = vmatprep.subr.bf16.mxu0 0
    %1329 = vmatpush1.bf16.xpose.msra.mxu0 0
    %1330 = vmatprep.subr.bf16.mxu0 0
    %1331 = vmatpush1.bf16.xpose.msra.mxu0 0
    %1332 = vmatprep.subr.bf16.mxu0 0
    %1333 = vmatpush1.bf16.xpose.msra.mxu0 0
    %1334 = vmatprep.subr.bf16.mxu0 0
    %1335 = vmatpush1.bf16.xpose.msra.mxu0 0
    %1336 = vmatprep.subr.bf16.mxu0 0
    %1337 = vmatpush1.bf16.xpose.msra.mxu0 0
    %1338 = vmatprep.mubr.bf16.mxu0 0
    %1339 = vmatmul.mubr.bf16.gmra.mrb[0].mxu0 %v1301
    %v1340 = vpop.f32.mrb[0].mxu0
    %v1341 = vadd.f32 %v253, %v1340
    %v1342 = vpop.f32.mrb[0].mxu0
    %v1343 = vpop.f32.mrb[0].mxu0
    %v1344 = vpop.f32.mrb[0].mxu0
    %1345 = vdwg.mxu0
    %1346 = vrot.lane.b32.xlu0 %v1239, 64
    %v1347 = vpop.permute.xlu0 %1346
    %v1349 = vsel %vm268, %v1239, 0
    %v1352 = vsel %vm268, %v1347, 0
    %1354 = vmatprep.subr.bf16.mxu0 0
    %1355 = vmatpush1.bf16.xpose.msra.mxu0 %v1352
    %1356 = vmatprep.subr.bf16.mxu0 0
    %1357 = vmatpush1.bf16.xpose.msra.mxu0 0
    %1358 = vmatprep.subr.bf16.mxu0 0
    %1359 = vmatpush1.bf16.xpose.msra.mxu0 0
    %1360 = vmatprep.subr.bf16.mxu0 0
    %1361 = vmatpush1.bf16.xpose.msra.mxu0 0
    %1362 = vmatprep.subr.bf16.mxu0 0
    %1363 = vmatpush1.bf16.xpose.msra.mxu0 0
    %1364 = vmatprep.subr.bf16.mxu0 0
    %1365 = vmatpush1.bf16.xpose.msra.mxu0 0
    %1366 = vmatprep.subr.bf16.mxu0 0
    %1367 = vmatpush1.bf16.xpose.msra.mxu0 0
    %1368 = vmatprep.subr.bf16.mxu0 0
    %1369 = vmatpush1.bf16.xpose.msra.mxu0 0
    %1370 = vmatprep.subr.bf16.mxu0 0
    %1371 = vmatpush1.bf16.xpose.msra.mxu0 0
    %1372 = vmatprep.subr.bf16.mxu0 0
    %1373 = vmatpush1.bf16.xpose.msra.mxu0 0
    %1374 = vmatprep.subr.bf16.mxu0 0
    %1375 = vmatpush1.bf16.xpose.msra.mxu0 0
    %1376 = vmatprep.subr.bf16.mxu0 0
    %1377 = vmatpush1.bf16.xpose.msra.mxu0 0
    %1378 = vmatprep.subr.bf16.mxu0 0
    %1379 = vmatpush1.bf16.xpose.msra.mxu0 0
    %1380 = vmatprep.subr.bf16.mxu0 0
    %1381 = vmatpush1.bf16.xpose.msra.mxu0 0
    %1382 = vmatprep.subr.bf16.mxu0 0
    %1383 = vmatpush1.bf16.xpose.msra.mxu0 0
    %1384 = vmatprep.subr.bf16.mxu0 0
    %1385 = vmatpush1.bf16.xpose.msra.mxu0 0
    %1386 = vmatprep.mubr.bf16.mxu0 0
    %1387 = vmatmul.mubr.bf16.gmra.mrb[0].mxu0 %v1349
    %v1388 = vpop.f32.mrb[0].mxu0
    %v1389 = vadd.f32 %v257, %v1388
    %v1390 = vpop.f32.mrb[0].mxu0
    %v1391 = vpop.f32.mrb[0].mxu0
    %v1392 = vpop.f32.mrb[0].mxu0
    %1393 = vdwg.mxu0
    %1394 = vrot.lane.b32.xlu0 %v1241, 64
    %v1395 = vpop.permute.xlu0 %1394
    %v1397 = vsel %vm268, %v1241, 0
    %v1400 = vsel %vm268, %v1395, 0
    %1402 = vmatprep.subr.bf16.mxu0 0
    %1403 = vmatpush1.bf16.xpose.msra.mxu0 %v1400
    %1404 = vmatprep.subr.bf16.mxu0 0
    %1405 = vmatpush1.bf16.xpose.msra.mxu0 0
    %1406 = vmatprep.subr.bf16.mxu0 0
    %1407 = vmatpush1.bf16.xpose.msra.mxu0 0
    %1408 = vmatprep.subr.bf16.mxu0 0
    %1409 = vmatpush1.bf16.xpose.msra.mxu0 0
    %1410 = vmatprep.subr.bf16.mxu0 0
    %1411 = vmatpush1.bf16.xpose.msra.mxu0 0
    %1412 = vmatprep.subr.bf16.mxu0 0
    %1413 = vmatpush1.bf16.xpose.msra.mxu0 0
    %1414 = vmatprep.subr.bf16.mxu0 0
    %1415 = vmatpush1.bf16.xpose.msra.mxu0 0
    %1416 = vmatprep.subr.bf16.mxu0 0
    %1417 = vmatpush1.bf16.xpose.msra.mxu0 0
    %1418 = vmatprep.subr.bf16.mxu0 0
    %1419 = vmatpush1.bf16.xpose.msra.mxu0 0
    %1420 = vmatprep.subr.bf16.mxu0 0
    %1421 = vmatpush1.bf16.xpose.msra.mxu0 0
    %1422 = vmatprep.subr.bf16.mxu0 0
    %1423 = vmatpush1.bf16.xpose.msra.mxu0 0
    %1424 = vmatprep.subr.bf16.mxu0 0
    %1425 = vmatpush1.bf16.xpose.msra.mxu0 0
    %1426 = vmatprep.subr.bf16.mxu0 0
    %1427 = vmatpush1.bf16.xpose.msra.mxu0 0
    %1428 = vmatprep.subr.bf16.mxu0 0
    %1429 = vmatpush1.bf16.xpose.msra.mxu0 0
    %1430 = vmatprep.subr.bf16.mxu0 0
    %1431 = vmatpush1.bf16.xpose.msra.mxu0 0
    %1432 = vmatprep.subr.bf16.mxu0 0
    %1433 = vmatpush1.bf16.xpose.msra.mxu0 0
    %1434 = vmatprep.mubr.bf16.mxu0 0
    %1435 = vmatmul.mubr.bf16.gmra.mrb[0].mxu0 %v1397
    %v1436 = vpop.f32.mrb[0].mxu0
    %v1437 = vadd.f32 %v261, %v1436
    %v1438 = vpop.f32.mrb[0].mxu0
    %v1439 = vpop.f32.mrb[0].mxu0
    %v1440 = vpop.f32.mrb[0].mxu0
    %1441 = vdwg.mxu0
    %v1442 = vsel %vm459, %v1293, -inf
    %1443 = vmax.xlane.f32.xlu0 %v1442
    %v1444 = vpop.xlane.xlu0 %1443
    %v1445 = vsel %vm459, %v1341, -inf
    %1446 = vmax.xlane.f32.xlu0 %v1445
    %v1447 = vpop.xlane.xlu0 %1446
    %v1448 = vsel %vm459, %v1389, -inf
    %1449 = vmax.xlane.f32.xlu0 %v1448
    %v1450 = vpop.xlane.xlu0 %1449
    %v1451 = vsel %vm459, %v1437, -inf
    %1452 = vmax.xlane.f32.xlu0 %v1451
    %v1453 = vpop.xlane.xlu0 %1452
    %v1454 = vsub.f32 %v1293, %v1444
    %v1455 = vsub.f32 %v1341, %v1447
    %v1456 = vsub.f32 %v1389, %v1450
    %v1457 = vsub.f32 %v1437, %v1453
    %v1458 = vmul.f32 %v1454, 1.442695
    %v1459 = vpow.pop %v1458
    %v1460 = vmul.f32 %v1455, 1.442695
    %v1461 = vpow.pop %v1460
    %v1462 = vmul.f32 %v1456, 1.442695
    %v1463 = vpow.pop %v1462
    %v1464 = vmul.f32 %v1457, 1.442695
    %v1465 = vpow.pop %v1464
    %v1466 = vsel %vm459, %v1459, 0.0
    %1467 = vadd.xlane.f32.xlu0 %v1466
    %v1468 = vpop.xlane.xlu0 %1467
    %v1469 = vsel %vm459, %v1461, 0.0
    %1470 = vadd.xlane.f32.xlu0 %v1469
    %v1471 = vpop.xlane.xlu0 %1470
    %v1472 = vsel %vm459, %v1463, 0.0
    %1473 = vadd.xlane.f32.xlu0 %v1472
    %v1474 = vpop.xlane.xlu0 %1473
    %v1475 = vsel %vm459, %v1465, 0.0
    %1476 = vadd.xlane.f32.xlu0 %v1475
    %v1477 = vpop.xlane.xlu0 %1476
    %v1478 = vrcp.pop %v1468
    %v1479 = vrcp.pop %v1471
    %v1480 = vrcp.pop %v1474
    %v1481 = vrcp.pop %v1477
    %v1482 = vmul.f32 %v1459, %v1478
    %v1483 = vmul.f32 %v1461, %v1479
    %v1484 = vmul.f32 %v1463, %v1480
    %v1485 = vmul.f32 %v1465, %v1481
    %v1486 = vpack.c.bf16 %v1482, %v1482
    %v1487 = vpack.c.bf16 %v1483, %v1483
    %v1488 = vpack.c.bf16 %v1484, %v1484
    %v1489 = vpack.c.bf16 %v1485, %v1485
    %v1491 = vsel %vm459, %v1486, 0
    %v1494 = vsel %vm511, %v1242, 0
    %1496 = vmatprep.subr.bf16.mxu0 0
    %1497 = vmatpush1.bf16.msra.mxu0 %v1494
    %1498 = vmatprep.subr.bf16.mxu0 0
    %1499 = vmatpush1.bf16.msra.mxu0 0
    %1500 = vmatprep.subr.bf16.mxu0 0
    %1501 = vmatpush1.bf16.msra.mxu0 0
    %1502 = vmatprep.subr.bf16.mxu0 0
    %1503 = vmatpush1.bf16.msra.mxu0 0
    %1504 = vmatprep.subr.bf16.mxu0 0
    %1505 = vmatpush1.bf16.msra.mxu0 0
    %1506 = vmatprep.subr.bf16.mxu0 0
    %1507 = vmatpush1.bf16.msra.mxu0 0
    %1508 = vmatprep.subr.bf16.mxu0 0
    %1509 = vmatpush1.bf16.msra.mxu0 0
    %1510 = vmatprep.subr.bf16.mxu0 0
    %1511 = vmatpush1.bf16.msra.mxu0 0
    %1512 = vmatprep.subr.bf16.mxu0 0
    %1513 = vmatpush1.bf16.msra.mxu0 0
    %1514 = vmatprep.subr.bf16.mxu0 0
    %1515 = vmatpush1.bf16.msra.mxu0 0
    %1516 = vmatprep.subr.bf16.mxu0 0
    %1517 = vmatpush1.bf16.msra.mxu0 0
    %1518 = vmatprep.subr.bf16.mxu0 0
    %1519 = vmatpush1.bf16.msra.mxu0 0
    %1520 = vmatprep.subr.bf16.mxu0 0
    %1521 = vmatpush1.bf16.msra.mxu0 0
    %1522 = vmatprep.subr.bf16.mxu0 0
    %1523 = vmatpush1.bf16.msra.mxu0 0
    %1524 = vmatprep.subr.bf16.mxu0 0
    %1525 = vmatpush1.bf16.msra.mxu0 0
    %1526 = vmatprep.subr.bf16.mxu0 0
    %1527 = vmatpush1.bf16.msra.mxu0 0
    %1528 = vmatprep.mubr.bf16.mxu0 0
    %1529 = vmatmul.mubr.bf16.gmra.mrb[0].mxu0 %v1491
    %v1530 = vpop.f32.mrb[0].mxu0
    %v1531 = vadd.f32 0.0, %v1530
    %v1532 = vpop.f32.mrb[0].mxu0
    %v1533 = vpop.f32.mrb[0].mxu0
    %v1534 = vpop.f32.mrb[0].mxu0
    %1535 = vdwg.mxu0
    %v1537 = vsel %vm459, %v1487, 0
    %v1540 = vsel %vm511, %v1243, 0
    %1542 = vmatprep.subr.bf16.mxu0 0
    %1543 = vmatpush1.bf16.msra.mxu0 %v1540
    %1544 = vmatprep.subr.bf16.mxu0 0
    %1545 = vmatpush1.bf16.msra.mxu0 0
    %1546 = vmatprep.subr.bf16.mxu0 0
    %1547 = vmatpush1.bf16.msra.mxu0 0
    %1548 = vmatprep.subr.bf16.mxu0 0
    %1549 = vmatpush1.bf16.msra.mxu0 0
    %1550 = vmatprep.subr.bf16.mxu0 0
    %1551 = vmatpush1.bf16.msra.mxu0 0
    %1552 = vmatprep.subr.bf16.mxu0 0
    %1553 = vmatpush1.bf16.msra.mxu0 0
    %1554 = vmatprep.subr.bf16.mxu0 0
    %1555 = vmatpush1.bf16.msra.mxu0 0
    %1556 = vmatprep.subr.bf16.mxu0 0
    %1557 = vmatpush1.bf16.msra.mxu0 0
    %1558 = vmatprep.subr.bf16.mxu0 0
    %1559 = vmatpush1.bf16.msra.mxu0 0
    %1560 = vmatprep.subr.bf16.mxu0 0
    %1561 = vmatpush1.bf16.msra.mxu0 0
    %1562 = vmatprep.subr.bf16.mxu0 0
    %1563 = vmatpush1.bf16.msra.mxu0 0
    %1564 = vmatprep.subr.bf16.mxu0 0
    %1565 = vmatpush1.bf16.msra.mxu0 0
    %1566 = vmatprep.subr.bf16.mxu0 0
    %1567 = vmatpush1.bf16.msra.mxu0 0
    %1568 = vmatprep.subr.bf16.mxu0 0
    %1569 = vmatpush1.bf16.msra.mxu0 0
    %1570 = vmatprep.subr.bf16.mxu0 0
    %1571 = vmatpush1.bf16.msra.mxu0 0
    %1572 = vmatprep.subr.bf16.mxu0 0
    %1573 = vmatpush1.bf16.msra.mxu0 0
    %1574 = vmatprep.mubr.bf16.mxu0 0
    %1575 = vmatmul.mubr.bf16.gmra.mrb[0].mxu0 %v1537
    %v1576 = vpop.f32.mrb[0].mxu0
    %v1577 = vadd.f32 0.0, %v1576
    %v1578 = vpop.f32.mrb[0].mxu0
    %v1579 = vpop.f32.mrb[0].mxu0
    %v1580 = vpop.f32.mrb[0].mxu0
    %1581 = vdwg.mxu0
    %v1583 = vsel %vm459, %v1488, 0
    %v1586 = vsel %vm511, %v1247, 0
    %1588 = vmatprep.subr.bf16.mxu0 0
    %1589 = vmatpush1.bf16.msra.mxu0 %v1586
    %1590 = vmatprep.subr.bf16.mxu0 0
    %1591 = vmatpush1.bf16.msra.mxu0 0
    %1592 = vmatprep.subr.bf16.mxu0 0
    %1593 = vmatpush1.bf16.msra.mxu0 0
    %1594 = vmatprep.subr.bf16.mxu0 0
    %1595 = vmatpush1.bf16.msra.mxu0 0
    %1596 = vmatprep.subr.bf16.mxu0 0
    %1597 = vmatpush1.bf16.msra.mxu0 0
    %1598 = vmatprep.subr.bf16.mxu0 0
    %1599 = vmatpush1.bf16.msra.mxu0 0
    %1600 = vmatprep.subr.bf16.mxu0 0
    %1601 = vmatpush1.bf16.msra.mxu0 0
    %1602 = vmatprep.subr.bf16.mxu0 0
    %1603 = vmatpush1.bf16.msra.mxu0 0
    %1604 = vmatprep.subr.bf16.mxu0 0
    %1605 = vmatpush1.bf16.msra.mxu0 0
    %1606 = vmatprep.subr.bf16.mxu0 0
    %1607 = vmatpush1.bf16.msra.mxu0 0
    %1608 = vmatprep.subr.bf16.mxu0 0
    %1609 = vmatpush1.bf16.msra.mxu0 0
    %1610 = vmatprep.subr.bf16.mxu0 0
    %1611 = vmatpush1.bf16.msra.mxu0 0
    %1612 = vmatprep.subr.bf16.mxu0 0
    %1613 = vmatpush1.bf16.msra.mxu0 0
    %1614 = vmatprep.subr.bf16.mxu0 0
    %1615 = vmatpush1.bf16.msra.mxu0 0
    %1616 = vmatprep.subr.bf16.mxu0 0
    %1617 = vmatpush1.bf16.msra.mxu0 0
    %1618 = vmatprep.subr.bf16.mxu0 0
    %1619 = vmatpush1.bf16.msra.mxu0 0
    %1620 = vmatprep.mubr.bf16.mxu0 0
    %1621 = vmatmul.mubr.bf16.gmra.mrb[0].mxu0 %v1583
    %v1622 = vpop.f32.mrb[0].mxu0
    %v1623 = vadd.f32 0.0, %v1622
    %v1624 = vpop.f32.mrb[0].mxu0
    %v1625 = vpop.f32.mrb[0].mxu0
    %v1626 = vpop.f32.mrb[0].mxu0
    %1627 = vdwg.mxu0
    %v1629 = vsel %vm459, %v1489, 0
    %v1632 = vsel %vm511, %v1249, 0
    %1634 = vmatprep.subr.bf16.mxu0 0
    %1635 = vmatpush1.bf16.msra.mxu0 %v1632
    %1636 = vmatprep.subr.bf16.mxu0 0
    %1637 = vmatpush1.bf16.msra.mxu0 0
    %1638 = vmatprep.subr.bf16.mxu0 0
    %1639 = vmatpush1.bf16.msra.mxu0 0
    %1640 = vmatprep.subr.bf16.mxu0 0
    %1641 = vmatpush1.bf16.msra.mxu0 0
    %1642 = vmatprep.subr.bf16.mxu0 0
    %1643 = vmatpush1.bf16.msra.mxu0 0
    %1644 = vmatprep.subr.bf16.mxu0 0
    %1645 = vmatpush1.bf16.msra.mxu0 0
    %1646 = vmatprep.subr.bf16.mxu0 0
    %1647 = vmatpush1.bf16.msra.mxu0 0
    %1648 = vmatprep.subr.bf16.mxu0 0
    %1649 = vmatpush1.bf16.msra.mxu0 0
    %1650 = vmatprep.subr.bf16.mxu0 0
    %1651 = vmatpush1.bf16.msra.mxu0 0
    %1652 = vmatprep.subr.bf16.mxu0 0
    %1653 = vmatpush1.bf16.msra.mxu0 0
    %1654 = vmatprep.subr.bf16.mxu0 0
    %1655 = vmatpush1.bf16.msra.mxu0 0
    %1656 = vmatprep.subr.bf16.mxu0 0
    %1657 = vmatpush1.bf16.msra.mxu0 0
    %1658 = vmatprep.subr.bf16.mxu0 0
    %1659 = vmatpush1.bf16.msra.mxu0 0
    %1660 = vmatprep.subr.bf16.mxu0 0
    %1661 = vmatpush1.bf16.msra.mxu0 0
    %1662 = vmatprep.subr.bf16.mxu0 0
    %1663 = vmatpush1.bf16.msra.mxu0 0
    %1664 = vmatprep.subr.bf16.mxu0 0
    %1665 = vmatpush1.bf16.msra.mxu0 0
    %1666 = vmatprep.mubr.bf16.mxu0 0
    %1667 = vmatmul.mubr.bf16.gmra.mrb[0].mxu0 %v1629
    %v1668 = vpop.f32.mrb[0].mxu0
    %v1669 = vadd.f32 0.0, %v1668
    %v1670 = vpop.f32.mrb[0].mxu0
    %v1671 = vpop.f32.mrb[0].mxu0
    %v1672 = vpop.f32.mrb[0].mxu0
    %1673 = vdwg.mxu0
    %s1674 = scalar_lea.vmem %s6, 32
    %v1675 = vld [vmem:[%s1674] sm:$0xf]
    %v1676 = vld [vmem:[%s1674 + $0x4] sm:$0xf]
    %v1677 = vld [vmem:[%s1674 + $0x8] sm:$0xf]
    %v1678 = vld [vmem:[%s1674 + $0xc] sm:$0xf]
    %v1679 = vld [vmem:[%s1674 + $0x10] sm:$0xf]
    %v1680 = vld [vmem:[%s1674 + $0x14] sm:$0xf]
    %v1681 = vld [vmem:[%s1674 + $0x18] sm:$0xf]
    %v1682 = vld [vmem:[%s1674 + $0x1c] sm:$0xf]
    %s1683 = scalar_lea.vmem %s7, 1
    %v1684 = vld [vmem:[%s1683] sm:$0x1]
    %v1685 = vpack.c.bf16 %v1577, %v1531
    %v1690 = vunpack.c.l.b16 %v1675
    %v1691 = vunpack.c.l.b16 %v1676
    %v1692 = vunpack.c.l.b16 %v1677
    %v1693 = vunpack.c.l.b16 %v1678
    %v1694 = vpack.c.b16 %v1691, %v1690
    %v1695 = vpack.c.b16 %v1693, %v1692
    %v1699 = vsel %vm268, %v1685, 0
    %1701 = vmatprep.subr.bf16.mxu0 0
    %1702 = vmatpush1.bf16.msra.mxu0 %v1694
    %1703 = vmatprep.subr.bf16.mxu0 0
    %1704 = vmatpush1.bf16.msra.mxu0 %v1695
    %1705 = vmatprep.subr.bf16.mxu0 0
    %1706 = vmatpush1.bf16.msra.mxu0 0
    %1707 = vmatprep.subr.bf16.mxu0 0
    %1708 = vmatpush1.bf16.msra.mxu0 0
    %1709 = vmatprep.subr.bf16.mxu0 0
    %1710 = vmatpush1.bf16.msra.mxu0 0
    %1711 = vmatprep.subr.bf16.mxu0 0
    %1712 = vmatpush1.bf16.msra.mxu0 0
    %1713 = vmatprep.subr.bf16.mxu0 0
    %1714 = vmatpush1.bf16.msra.mxu0 0
    %1715 = vmatprep.subr.bf16.mxu0 0
    %1716 = vmatpush1.bf16.msra.mxu0 0
    %1717 = vmatprep.subr.bf16.mxu0 0
    %1718 = vmatpush1.bf16.msra.mxu0 0
    %1719 = vmatprep.subr.bf16.mxu0 0
    %1720 = vmatpush1.bf16.msra.mxu0 0
    %1721 = vmatprep.subr.bf16.mxu0 0
    %1722 = vmatpush1.bf16.msra.mxu0 0
    %1723 = vmatprep.subr.bf16.mxu0 0
    %1724 = vmatpush1.bf16.msra.mxu0 0
    %1725 = vmatprep.subr.bf16.mxu0 0
    %1726 = vmatpush1.bf16.msra.mxu0 0
    %1727 = vmatprep.subr.bf16.mxu0 0
    %1728 = vmatpush1.bf16.msra.mxu0 0
    %1729 = vmatprep.subr.bf16.mxu0 0
    %1730 = vmatpush1.bf16.msra.mxu0 0
    %1731 = vmatprep.subr.bf16.mxu0 0
    %1732 = vmatpush1.bf16.msra.mxu0 0
    %1733 = vmatprep.mubr.bf16.mxu0 0
    %1734 = vmatmul.mubr.bf16.gmra.mrb[0].mxu0 %v1699
    %v1735 = vpop.f32.mrb[0].mxu0
    %v1736 = vadd.f32 0.0, %v1735
    %v1737 = vpop.f32.mrb[0].mxu0
    %v1738 = vpop.f32.mrb[0].mxu0
    %v1739 = vadd.f32 0.0, %v1738
    %v1740 = vpop.f32.mrb[0].mxu0
    %1741 = vdwg.mxu0
    %v1743 = vlaneseq
    %v1744 = vshrl.u32 %v1743, 7
    %v1745 = vsub.s32 0, %v1744
    %v1746 = vrot.slane %v1684, %v1745
    %v1748 = vadd.f32 %v1746, %v1736
    %v1749 = vadd.f32 %v1746, %v1739
    %v1750 = vpack.c.bf16 %v1669, %v1623
    %v1755 = vunpack.c.l.b16 %v1679
    %v1756 = vunpack.c.l.b16 %v1680
    %v1757 = vunpack.c.l.b16 %v1681
    %v1758 = vunpack.c.l.b16 %v1682
    %v1759 = vpack.c.b16 %v1756, %v1755
    %v1760 = vpack.c.b16 %v1758, %v1757
    %v1764 = vsel %vm268, %v1750, 0
    %1766 = vmatprep.subr.bf16.mxu0 0
    %1767 = vmatpush1.bf16.msra.mxu0 %v1759
    %1768 = vmatprep.subr.bf16.mxu0 0
    %1769 = vmatpush1.bf16.msra.mxu0 %v1760
    %1770 = vmatprep.subr.bf16.mxu0 0
    %1771 = vmatpush1.bf16.msra.mxu0 0
    %1772 = vmatprep.subr.bf16.mxu0 0
    %1773 = vmatpush1.bf16.msra.mxu0 0
    %1774 = vmatprep.subr.bf16.mxu0 0
    %1775 = vmatpush1.bf16.msra.mxu0 0
    %1776 = vmatprep.subr.bf16.mxu0 0
    %1777 = vmatpush1.bf16.msra.mxu0 0
    %1778 = vmatprep.subr.bf16.mxu0 0
    %1779 = vmatpush1.bf16.msra.mxu0 0
    %1780 = vmatprep.subr.bf16.mxu0 0
    %1781 = vmatpush1.bf16.msra.mxu0 0
    %1782 = vmatprep.subr.bf16.mxu0 0
    %1783 = vmatpush1.bf16.msra.mxu0 0
    %1784 = vmatprep.subr.bf16.mxu0 0
    %1785 = vmatpush1.bf16.msra.mxu0 0
    %1786 = vmatprep.subr.bf16.mxu0 0
    %1787 = vmatpush1.bf16.msra.mxu0 0
    %1788 = vmatprep.subr.bf16.mxu0 0
    %1789 = vmatpush1.bf16.msra.mxu0 0
    %1790 = vmatprep.subr.bf16.mxu0 0
    %1791 = vmatpush1.bf16.msra.mxu0 0
    %1792 = vmatprep.subr.bf16.mxu0 0
    %1793 = vmatpush1.bf16.msra.mxu0 0
    %1794 = vmatprep.subr.bf16.mxu0 0
    %1795 = vmatpush1.bf16.msra.mxu0 0
    %1796 = vmatprep.subr.bf16.mxu0 0
    %1797 = vmatpush1.bf16.msra.mxu0 0
    %1798 = vmatprep.mubr.bf16.mxu0 0
    %1799 = vmatmul.mubr.bf16.gmra.mrb[0].mxu0 %v1764
    %v1800 = vpop.f32.mrb[0].mxu0
    %v1801 = vadd.f32 0.0, %v1800
    %v1802 = vpop.f32.mrb[0].mxu0
    %v1803 = vpop.f32.mrb[0].mxu0
    %v1804 = vadd.f32 0.0, %v1803
    %v1805 = vpop.f32.mrb[0].mxu0
    %1806 = vdwg.mxu0
    %v1807 = vadd.f32 %v1748, %v1801
    %v1808 = vadd.f32 %v1749, %v1804
    %v1809 = vadd.f32 %v1123, %v1807
    %v1810 = vadd.f32 %v1124, %v1808
    %s1811 = scalar_lea.vmem %s8, 1
    %v1812 = vld [vmem:[%s1811] sm:$0x1]
    %s1813 = scalar_lea.vmem %s9, 1
    %v1814 = vld [vmem:[%s1813] sm:$0x1]
    %v1815 = vsel %vm75, %v1809, 0.0
    %1816 = vadd.xlane.f32.xlu0 %v1815
    %v1817 = vpop.xlane.xlu0 %1816
    %v1818 = vsel %vm75, %v1810, 0.0
    %1819 = vadd.xlane.f32.xlu0 %v1818
    %v1820 = vpop.xlane.xlu0 %1819
    %v1821 = vmul.f32 %v1817, %v82
    %v1822 = vmul.f32 %v1820, %v82
    %v1823 = vsub.f32 %v1809, %v1821
    %v1824 = vsub.f32 %v1810, %v1822
    %v1825 = vmul.f32 %v1823, %v1823
    %v1826 = vmul.f32 %v1824, %v1824
    %v1827 = vsel %vm75, %v1825, 0.0
    %1828 = vadd.xlane.f32.xlu0 %v1827
    %v1829 = vpop.xlane.xlu0 %1828
    %v1830 = vsel %vm75, %v1826, 0.0
    %1831 = vadd.xlane.f32.xlu0 %v1830
    %v1832 = vpop.xlane.xlu0 %1831
    %v1833 = vmul.f32 %v1829, %v82
    %v1834 = vmul.f32 %v1832, %v82
    %v1835 = vadd.f32 %v1833, 1e-05
    %v1836 = vadd.f32 %v1834, 1e-05
    %v1837 = vrsqrt.pop %v1835
    %v1838 = vrsqrt.pop %v1836
    %v1839 = vmul.f32 %v1823, %v1837
    %v1840 = vmul.f32 %v1824, %v1838
    %v1842 = vlaneseq
    %v1843 = vshrl.u32 %v1842, 7
    %v1844 = vsub.s32 0, %v1843
    %v1845 = vrot.slane %v1812, %v1844
    %v1847 = vmul.f32 %v1839, %v1845
    %v1848 = vmul.f32 %v1840, %v1845
    %v1850 = vlaneseq
    %v1851 = vshrl.u32 %v1850, 7
    %v1852 = vsub.s32 0, %v1851
    %v1853 = vrot.slane %v1814, %v1852
    %v1855 = vadd.f32 %v1847, %v1853
    %v1856 = vadd.f32 %v1848, %v1853
    %v1857 = vpack.c.bf16 %v1856, %v1855
    %s1858 = scalar_lea.vmem %s10, 32
    %v1859 = vld [vmem:[%s1858] sm:$0xf]
    %v1860 = vld [vmem:[%s1858 + $0x4] sm:$0xf]
    %v1861 = vld [vmem:[%s1858 + $0x8] sm:$0xf]
    %v1862 = vld [vmem:[%s1858 + $0xc] sm:$0xf]
    %v1863 = vld [vmem:[%s1858 + $0x10] sm:$0xf]
    %v1864 = vld [vmem:[%s1858 + $0x14] sm:$0xf]
    %v1865 = vld [vmem:[%s1858 + $0x18] sm:$0xf]
    %v1866 = vld [vmem:[%s1858 + $0x1c] sm:$0xf]
    %s1867 = scalar_lea.vmem %s11, 1
    %v1868 = vld [vmem:[%s1867] sm:$0x1]
    %v1870 = vlaneseq
    %v1871 = vshrl.u32 %v1870, 7
    %v1872 = vsub.s32 0, %v1871
    %v1873 = vrot.slane %v1868, %v1872
    %v1883 = vunpack.c.l.b16 %v1859
    %v1884 = vunpack.c.l.b16 %v1860
    %v1885 = vunpack.c.l.b16 %v1861
    %v1886 = vunpack.c.l.b16 %v1862
    %v1887 = vunpack.c.l.b16 %v1863
    %v1888 = vunpack.c.l.b16 %v1864
    %v1889 = vunpack.c.l.b16 %v1865
    %v1890 = vunpack.c.l.b16 %v1866
    %v1891 = vpack.c.b16 %v1884, %v1883
    %v1892 = vpack.c.b16 %v1886, %v1885
    %v1893 = vpack.c.b16 %v1888, %v1887
    %v1894 = vpack.c.b16 %v1890, %v1889
    %v1900 = vsel %vm75, %v1857, 0
    %1902 = vmatprep.subr.bf16.mxu0 0
    %1903 = vmatpush1.bf16.msra.mxu0 %v1891
    %1904 = vmatprep.subr.bf16.mxu0 0
    %1905 = vmatpush1.bf16.msra.mxu0 %v1892
    %1906 = vmatprep.subr.bf16.mxu0 0
    %1907 = vmatpush1.bf16.msra.mxu0 %v1893
    %1908 = vmatprep.subr.bf16.mxu0 0
    %1909 = vmatpush1.bf16.msra.mxu0 %v1894
    %1910 = vmatprep.subr.bf16.mxu0 0
    %1911 = vmatpush1.bf16.msra.mxu0 0
    %1912 = vmatprep.subr.bf16.mxu0 0
    %1913 = vmatpush1.bf16.msra.mxu0 0
    %1914 = vmatprep.subr.bf16.mxu0 0
    %1915 = vmatpush1.bf16.msra.mxu0 0
    %1916 = vmatprep.subr.bf16.mxu0 0
    %1917 = vmatpush1.bf16.msra.mxu0 0
    %1918 = vmatprep.subr.bf16.mxu0 0
    %1919 = vmatpush1.bf16.msra.mxu0 0
    %1920 = vmatprep.subr.bf16.mxu0 0
    %1921 = vmatpush1.bf16.msra.mxu0 0
    %1922 = vmatprep.subr.bf16.mxu0 0
    %1923 = vmatpush1.bf16.msra.mxu0 0
    %1924 = vmatprep.subr.bf16.mxu0 0
    %1925 = vmatpush1.bf16.msra.mxu0 0
    %1926 = vmatprep.subr.bf16.mxu0 0
    %1927 = vmatpush1.bf16.msra.mxu0 0
    %1928 = vmatprep.subr.bf16.mxu0 0
    %1929 = vmatpush1.bf16.msra.mxu0 0
    %1930 = vmatprep.subr.bf16.mxu0 0
    %1931 = vmatpush1.bf16.msra.mxu0 0
    %1932 = vmatprep.subr.bf16.mxu0 0
    %1933 = vmatpush1.bf16.msra.mxu0 0
    %1934 = vmatprep.mubr.bf16.mxu0 0
    %1935 = vmatmul.mubr.bf16.gmra.mrb[0].mxu0 %v1900
    %v1936 = vpop.f32.mrb[0].mxu0
    %v1937 = vadd.f32 %v1873, %v1936
    %v1938 = vpop.f32.mrb[0].mxu0
    %v1939 = vpop.f32.mrb[0].mxu0
    %v1940 = vadd.f32 %v1873, %v1939
    %v1941 = vpop.f32.mrb[0].mxu0
    %1942 = vdwg.mxu0
    %v1943 = vmul.f32 %v1937, 0.5
    %v1944 = vmul.f32 %v1940, 0.5
    %v1945 = vmul.f32 %v1937, 0.70710677
    %v1946 = vmul.f32 %v1940, 0.70710677
    %v1947 = verf.f32.pop %v1945
    %v1948 = verf.f32.pop %v1946
    %v1949 = vadd.f32 %v1947, 1.0
    %v1950 = vadd.f32 %v1948, 1.0
    %v1951 = vmul.f32 %v1943, %v1949
    %v1952 = vmul.f32 %v1944, %v1950
    %v1953 = vpack.c.bf16 %v1952, %v1951
    %s1954 = scalar_lea.vmem %s12, 64
    %v1955 = vld [vmem:[%s1954] sm:$0xf]
    %v1956 = vld [vmem:[%s1954 + $0x4] sm:$0xf]
    %v1957 = vld [vmem:[%s1954 + $0x8] sm:$0xf]
    %v1958 = vld [vmem:[%s1954 + $0xc] sm:$0xf]
    %v1959 = vld [vmem:[%s1954 + $0x10] sm:$0xf]
    %v1960 = vld [vmem:[%s1954 + $0x14] sm:$0xf]
    %v1961 = vld [vmem:[%s1954 + $0x18] sm:$0xf]
    %v1962 = vld [vmem:[%s1954 + $0x1c] sm:$0xf]
    %v1963 = vld [vmem:[%s1954 + $0x20] sm:$0xf]
    %v1964 = vld [vmem:[%s1954 + $0x24] sm:$0xf]
    %v1965 = vld [vmem:[%s1954 + $0x28] sm:$0xf]
    %v1966 = vld [vmem:[%s1954 + $0x2c] sm:$0xf]
    %v1967 = vld [vmem:[%s1954 + $0x30] sm:$0xf]
    %v1968 = vld [vmem:[%s1954 + $0x34] sm:$0xf]
    %v1969 = vld [vmem:[%s1954 + $0x38] sm:$0xf]
    %v1970 = vld [vmem:[%s1954 + $0x3c] sm:$0xf]
    %s1971 = scalar_lea.vmem %s13, 1
    %v1972 = vld [vmem:[%s1971] sm:$0x1]
    %v1974 = vlaneseq
    %v1975 = vshrl.u32 %v1974, 7
    %v1976 = vsub.s32 0, %v1975
    %v1977 = vrot.slane %v1972, %v1976
    %v1995 = vunpack.c.l.b16 %v1955
    %v1996 = vunpack.c.l.b16 %v1956
    %v1997 = vunpack.c.l.b16 %v1957
    %v1998 = vunpack.c.l.b16 %v1958
    %v1999 = vunpack.c.l.b16 %v1959
    %v2000 = vunpack.c.l.b16 %v1960
    %v2001 = vunpack.c.l.b16 %v1961
    %v2002 = vunpack.c.l.b16 %v1962
    %v2003 = vunpack.c.l.b16 %v1963
    %v2004 = vunpack.c.l.b16 %v1964
    %v2005 = vunpack.c.l.b16 %v1965
    %v2006 = vunpack.c.l.b16 %v1966
    %v2007 = vunpack.c.l.b16 %v1967
    %v2008 = vunpack.c.l.b16 %v1968
    %v2009 = vunpack.c.l.b16 %v1969
    %v2010 = vunpack.c.l.b16 %v1970
    %v2011 = vpack.c.b16 %v1996, %v1995
    %v2012 = vpack.c.b16 %v1998, %v1997
    %v2013 = vpack.c.b16 %v2000, %v1999
    %v2014 = vpack.c.b16 %v2002, %v2001
    %v2015 = vpack.c.b16 %v2004, %v2003
    %v2016 = vpack.c.b16 %v2006, %v2005
    %v2017 = vpack.c.b16 %v2008, %v2007
    %v2018 = vpack.c.b16 %v2010, %v2009
    %2027 = vmatprep.subr.bf16.mxu0 0
    %2028 = vmatpush1.bf16.msra.mxu0 %v2011
    %2029 = vmatprep.subr.bf16.mxu0 0
    %2030 = vmatpush1.bf16.msra.mxu0 %v2012
    %2031 = vmatprep.subr.bf16.mxu0 0
    %2032 = vmatpush1.bf16.msra.mxu0 %v2013
    %2033 = vmatprep.subr.bf16.mxu0 0
    %2034 = vmatpush1.bf16.msra.mxu0 %v2014
    %2035 = vmatprep.subr.bf16.mxu0 0
    %2036 = vmatpush1.bf16.msra.mxu0 %v2015
    %2037 = vmatprep.subr.bf16.mxu0 0
    %2038 = vmatpush1.bf16.msra.mxu0 %v2016
    %2039 = vmatprep.subr.bf16.mxu0 0
    %2040 = vmatpush1.bf16.msra.mxu0 %v2017
    %2041 = vmatprep.subr.bf16.mxu0 0
    %2042 = vmatpush1.bf16.msra.mxu0 %v2018
    %2043 = vmatprep.subr.bf16.mxu0 0
    %2044 = vmatpush1.bf16.msra.mxu0 0
    %2045 = vmatprep.subr.bf16.mxu0 0
    %2046 = vmatpush1.bf16.msra.mxu0 0
    %2047 = vmatprep.subr.bf16.mxu0 0
    %2048 = vmatpush1.bf16.msra.mxu0 0
    %2049 = vmatprep.subr.bf16.mxu0 0
    %2050 = vmatpush1.bf16.msra.mxu0 0
    %2051 = vmatprep.subr.bf16.mxu0 0
    %2052 = vmatpush1.bf16.msra.mxu0 0
    %2053 = vmatprep.subr.bf16.mxu0 0
    %2054 = vmatpush1.bf16.msra.mxu0 0
    %2055 = vmatprep.subr.bf16.mxu0 0
    %2056 = vmatpush1.bf16.msra.mxu0 0
    %2057 = vmatprep.subr.bf16.mxu0 0
    %2058 = vmatpush1.bf16.msra.mxu0 0
    %2059 = vmatprep.mubr.bf16.mxu0 0
    %2060 = vmatmul.mubr.bf16.gmra.mrb[0].mxu0 %v1953
    %v2061 = vpop.f32.mrb[0].mxu0
    %v2062 = vadd.f32 %v1977, %v2061
    %v2063 = vpop.f32.mrb[0].mxu0
    %v2064 = vpop.f32.mrb[0].mxu0
    %v2065 = vadd.f32 %v1977, %v2064
    %v2066 = vpop.f32.mrb[0].mxu0
    %2067 = vdwg.mxu0
    %v2068 = vadd.f32 %v1855, %v2062
    %v2069 = vadd.f32 %v1856, %v2065
    %s2070 = scalar_lea.vmem %s14, 1
    %v2071 = vld [vmem:[%s2070] sm:$0x1]
    %s2072 = scalar_lea.vmem %s15, 1
    %v2073 = vld [vmem:[%s2072] sm:$0x1]
    %v2074 = vsel %vm75, %v2068, 0.0
    %2075 = vadd.xlane.f32.xlu0 %v2074
    %v2076 = vpop.xlane.xlu0 %2075
    %v2077 = vsel %vm75, %v2069, 0.0
    %2078 = vadd.xlane.f32.xlu0 %v2077
    %v2079 = vpop.xlane.xlu0 %2078
    %v2080 = vmul.f32 %v2076, %v82
    %v2081 = vmul.f32 %v2079, %v82
    %v2082 = vsub.f32 %v2068, %v2080
    %v2083 = vsub.f32 %v2069, %v2081
    %v2084 = vmul.f32 %v2082, %v2082
    %v2085 = vmul.f32 %v2083, %v2083
    %v2086 = vsel %vm75, %v2084, 0.0
    %2087 = vadd.xlane.f32.xlu0 %v2086
    %v2088 = vpop.xlane.xlu0 %2087
    %v2089 = vsel %vm75, %v2085, 0.0
    %2090 = vadd.xlane.f32.xlu0 %v2089
    %v2091 = vpop.xlane.xlu0 %2090
    %v2092 = vmul.f32 %v2088, %v82
    %v2093 = vmul.f32 %v2091, %v82
    %v2094 = vadd.f32 %v2092, 1e-05
    %v2095 = vadd.f32 %v2093, 1e-05
    %v2096 = vrsqrt.pop %v2094
    %v2097 = vrsqrt.pop %v2095
    %v2098 = vmul.f32 %v2082, %v2096
    %v2099 = vmul.f32 %v2083, %v2097
    %v2101 = vlaneseq
    %v2102 = vshrl.u32 %v2101, 7
    %v2103 = vsub.s32 0, %v2102
    %v2104 = vrot.slane %v2071, %v2103
    %v2106 = vmul.f32 %v2098, %v2104
    %v2107 = vmul.f32 %v2099, %v2104
    %v2109 = vlaneseq
    %v2110 = vshrl.u32 %v2109, 7
    %v2111 = vsub.s32 0, %v2110
    %v2112 = vrot.slane %v2073, %v2111
    %v2114 = vadd.f32 %v2106, %v2112
    %v2115 = vadd.f32 %v2107, %v2112
    %v2116 = vpack.c.bf16 %v2114, %v2114
    %v2117 = vpack.c.bf16 %v2115, %v2115
    %v2118 = vld [vmem:[%s16] sm:$0xf]
    %v2119 = vld [vmem:[%s16 + $0x4] sm:$0xf]
    %v2120 = vld [vmem:[%s16 + $0x8] sm:$0xf]
    %v2121 = vld [vmem:[%s16 + $0xc] sm:$0xf]
    %v2122 = vld [vmem:[%s16 + $0x10] sm:$0xf]
    %v2123 = vld [vmem:[%s16 + $0x14] sm:$0xf]
    %v2124 = vld [vmem:[%s16 + $0x18] sm:$0xf]
    %v2125 = vld [vmem:[%s16 + $0x1c] sm:$0xf]
    %v2126 = vld [vmem:[%s17] sm:$0x1]
    %v2128 = vlaneseq
    %v2129 = vshrl.u32 %v2128, 7
    %v2130 = vsub.s32 0, %v2129
    %v2131 = vrot.slane %v2126, %v2130
    %v2135 = vunpack.c.l.b16 %v2116
    %v2136 = vunpack.c.l.b16 %v2117
    %v2137 = vrot.slane %v2136, 7
    %vm2138 = vcmask 1041409
    %v2139 = vsel %vm2138, %v2137, %v2135
    %v2140 = vpack.c.b16 %v2139, %v2139
    %v2149 = vunpack.c.l.b16 %v2118
    %v2150 = vunpack.c.l.b16 %v2119
    %v2151 = vunpack.c.l.b16 %v2120
    %v2152 = vunpack.c.l.b16 %v2121
    %v2153 = vunpack.c.l.b16 %v2122
    %v2154 = vunpack.c.l.b16 %v2123
    %v2155 = vunpack.c.l.b16 %v2124
    %v2156 = vunpack.c.l.b16 %v2125
    %v2157 = vpack.c.b16 %v2150, %v2149
    %v2158 = vpack.c.b16 %v2152, %v2151
    %v2159 = vpack.c.b16 %v2154, %v2153
    %v2160 = vpack.c.b16 %v2156, %v2155
    %v2166 = vsel %vm75, %v2140, 0
    %2168 = vmatprep.subr.bf16.mxu0 0
    %2169 = vmatpush1.bf16.msra.mxu0 %v2157
    %2170 = vmatprep.subr.bf16.mxu0 0
    %2171 = vmatpush1.bf16.msra.mxu0 %v2158
    %2172 = vmatprep.subr.bf16.mxu0 0
    %2173 = vmatpush1.bf16.msra.mxu0 %v2159
    %2174 = vmatprep.subr.bf16.mxu0 0
    %2175 = vmatpush1.bf16.msra.mxu0 %v2160
    %2176 = vmatprep.subr.bf16.mxu0 0
    %2177 = vmatpush1.bf16.msra.mxu0 0
    %2178 = vmatprep.subr.bf16.mxu0 0
    %2179 = vmatpush1.bf16.msra.mxu0 0
    %2180 = vmatprep.subr.bf16.mxu0 0
    %2181 = vmatpush1.bf16.msra.mxu0 0
    %2182 = vmatprep.subr.bf16.mxu0 0
    %2183 = vmatpush1.bf16.msra.mxu0 0
    %2184 = vmatprep.subr.bf16.mxu0 0
    %2185 = vmatpush1.bf16.msra.mxu0 0
    %2186 = vmatprep.subr.bf16.mxu0 0
    %2187 = vmatpush1.bf16.msra.mxu0 0
    %2188 = vmatprep.subr.bf16.mxu0 0
    %2189 = vmatpush1.bf16.msra.mxu0 0
    %2190 = vmatprep.subr.bf16.mxu0 0
    %2191 = vmatpush1.bf16.msra.mxu0 0
    %2192 = vmatprep.subr.bf16.mxu0 0
    %2193 = vmatpush1.bf16.msra.mxu0 0
    %2194 = vmatprep.subr.bf16.mxu0 0
    %2195 = vmatpush1.bf16.msra.mxu0 0
    %2196 = vmatprep.subr.bf16.mxu0 0
    %2197 = vmatpush1.bf16.msra.mxu0 0
    %2198 = vmatprep.subr.bf16.mxu0 0
    %2199 = vmatpush1.bf16.msra.mxu0 0
    %2200 = vmatprep.mubr.bf16.mxu0 0
    %2201 = vmatmul.mubr.bf16.gmra.mrb[0].mxu0 %v2166
    %v2202 = vpop.f32.mrb[0].mxu0
    %v2203 = vadd.f32 %v2131, %v2202
    %v2204 = vpop.f32.mrb[0].mxu0
    %v2205 = vpop.f32.mrb[0].mxu0
    %v2206 = vpop.f32.mrb[0].mxu0
    %2207 = vdwg.mxu0
    %v2208 = vtanh.pop %v2203
    %v2209 = vpack.c.bf16 %v2208, %v2208
    %v2210 = vld [vmem:[%s18] sm:$0xf]
    %v2211 = vld [vmem:[%s18 + $0x4] sm:$0xf]
    %v2212 = vld [vmem:[%s18 + $0x8] sm:$0xf]
    %v2213 = vld [vmem:[%s18 + $0xc] sm:$0xf]
    %v2214 = vld [vmem:[%s18 + $0x10] sm:$0xf]
    %v2215 = vld [vmem:[%s18 + $0x14] sm:$0xf]
    %v2216 = vld [vmem:[%s18 + $0x18] sm:$0xf]
    %v2217 = vld [vmem:[%s18 + $0x1c] sm:$0xf]
    %v2218 = vld [vmem:[%s19] sm:$0x1]
    %v2220 = vlaneseq
    %v2221 = vshrl.u32 %v2220, 7
    %v2222 = vsub.s32 0, %v2221
    %v2223 = vrot.slane %v2218, %v2222
    %v2233 = vunpack.c.l.b16 %v2210
    %v2234 = vunpack.c.l.b16 %v2211
    %v2235 = vunpack.c.l.b16 %v2212
    %v2236 = vunpack.c.l.b16 %v2213
    %v2237 = vunpack.c.l.b16 %v2214
    %v2238 = vunpack.c.l.b16 %v2215
    %v2239 = vunpack.c.l.b16 %v2216
    %v2240 = vunpack.c.l.b16 %v2217
    %v2241 = vpack.c.b16 %v2234, %v2233
    %v2242 = vpack.c.b16 %v2236, %v2235
    %v2243 = vpack.c.b16 %v2238, %v2237
    %v2244 = vpack.c.b16 %v2240, %v2239
    %v2250 = vsel %vm75, %v2209, 0
    %2252 = vmatprep.subr.bf16.mxu0 0
    %2253 = vmatpush1.bf16.msra.mxu0 %v2241
    %2254 = vmatprep.subr.bf16.mxu0 0
    %2255 = vmatpush1.bf16.msra.mxu0 %v2242
    %2256 = vmatprep.subr.bf16.mxu0 0
    %2257 = vmatpush1.bf16.msra.mxu0 %v2243
    %2258 = vmatprep.subr.bf16.mxu0 0
    %2259 = vmatpush1.bf16.msra.mxu0 %v2244
    %2260 = vmatprep.subr.bf16.mxu0 0
    %2261 = vmatpush1.bf16.msra.mxu0 0
    %2262 = vmatprep.subr.bf16.mxu0 0
    %2263 = vmatpush1.bf16.msra.mxu0 0
    %2264 = vmatprep.subr.bf16.mxu0 0
    %2265 = vmatpush1.bf16.msra.mxu0 0
    %2266 = vmatprep.subr.bf16.mxu0 0
    %2267 = vmatpush1.bf16.msra.mxu0 0
    %2268 = vmatprep.subr.bf16.mxu0 0
    %2269 = vmatpush1.bf16.msra.mxu0 0
    %2270 = vmatprep.subr.bf16.mxu0 0
    %2271 = vmatpush1.bf16.msra.mxu0 0
    %2272 = vmatprep.subr.bf16.mxu0 0
    %2273 = vmatpush1.bf16.msra.mxu0 0
    %2274 = vmatprep.subr.bf16.mxu0 0
    %2275 = vmatpush1.bf16.msra.mxu0 0
    %2276 = vmatprep.subr.bf16.mxu0 0
    %2277 = vmatpush1.bf16.msra.mxu0 0
    %2278 = vmatprep.subr.bf16.mxu0 0
    %2279 = vmatpush1.bf16.msra.mxu0 0
    %2280 = vmatprep.subr.bf16.mxu0 0
    %2281 = vmatpush1.bf16.msra.mxu0 0
    %2282 = vmatprep.subr.bf16.mxu0 0
    %2283 = vmatpush1.bf16.msra.mxu0 0
    %2284 = vmatprep.mubr.bf16.mxu0 0
    %2285 = vmatmul.mubr.bf16.gmra.mrb[0].mxu0 %v2250
    %v2286 = vpop.f32.mrb[0].mxu0
    %v2287 = vadd.f32 %v2223, %v2286
    %v2288 = vpop.f32.mrb[0].mxu0
    %v2289 = vpop.f32.mrb[0].mxu0
    %v2290 = vpop.f32.mrb[0].mxu0
    %2291 = vdwg.mxu0
    %vm2292 = vcmask 9216
    %2293 = vst.msk [vmem:[#allocation2] sm:$0x3] %vm2292, %v2287
    // Predicated region
    $region82: #{roberta_forward.1} parent=1 // pred_check
      _
    $region83: #{roberta_forward.1} parent=1 // pred_check_branch
      %2295 = sbr.rel (0) target = $region85
    $region84: #{roberta_forward.1} parent=1 // pred_region
      %s2297 = ssub.s32 32, 32
      %2298 = vsyncadd [#allocation3], %s2297
      %s2300 = sshll.u32 [#allocation2], 4
      %s2301 = int_to_ptr.vmem [resolvable:$true] %s2300
      %2303 = dma.vmem_to_hbm [thread:$0]  %s2301, 32, %s20, [#allocation3]
    $region85: #{roberta_forward.1} parent=1 // pred_fallthru
      _
    // Predicated region
    $region86: #{roberta_forward.1} parent=1 // pred_check
      _
    $region87: #{roberta_forward.1} parent=1 // pred_check_branch
      %2305 = sbr.rel (0) target = $region89
    $region88: #{roberta_forward.1} parent=1 // pred_region
      %2306 = dma.done [#allocation3], 32
    $region89: #{roberta_forward.1} parent=1 // pred_fallthru
      _
    %2307 = vsyncpa [#allocation3], 1

</llo_original>
